<compile_context>
chip_gen: v7x
topology: tpu7x:2x2x1
jax: 0.10.0
libtpu: 0.0.40
codegen_flags: <defaults>
</compile_context>

<pallas_src>
import functools
import math

import jax
import jax.numpy as jnp
from jax.experimental import pallas as pl
from jax.experimental.pallas import tpu as pltpu

_MIB = 1024 * 1024

# Below this total size, skip Pallas entirely (launch overhead dominates).
_MIN_PALLAS_BYTES = 1 * _MIB


def _drop_path_kernel(x_ref, s_ref, o_ref):
    # x_ref: (tr, C) tile of the flattened input
    # s_ref: (tr, 1) per-row scale (0, 1, or 1/keep_prob), broadcast over lanes
    # o_ref: (tr, C) output tile
    o_ref[...] = (x_ref[...] * s_ref[...]).astype(o_ref.dtype)


@functools.lru_cache(maxsize=None)
def _device_tile_params():
    """Pick (tile_bytes, vmem_limit_bytes) for the local TPU generation.

    Peak VMEM per call is ~4x tile_bytes (double-buffered x-in and out blocks)
    plus tiny scale buffers.
      * v7x : 8 MiB tiles (~32 MiB of buffers) -> needs the scoped-VMEM limit
              raised past the 32 MiB default; 48 MiB still < 64 MiB physical.
      * v6e : 4 MiB tiles (~16 MiB) fits the 32 MiB default; no override.
      * v5e / unknown: 2 MiB tiles (~8 MiB) fits the 16 MiB default.
    """
    try:
        kind = jax.devices()[0].device_kind.lower()
    except Exception:  # pragma: no cover - defensive
        kind = ""
    if "v7" in kind or "7x" in kind:
        return 8 * _MIB, 48 * _MIB
    if "v6" in kind:
        return 4 * _MIB, None
    return 2 * _MIB, None


def _choose_layout(F, itemsize, B, tile_bytes):
    """Pick (C, R, tr): per-sample features reshaped to (R, C), row tile tr.

    C = largest multiple-of-128 divisor of F whose `sub`-row slab stays within
    the tile budget (sub = dtype-aware sublane packing: 8 f32 / 16 bf16 /
    32 int8); fall back to C == F (full lane extent, tail-masked stores but
    correct) when F is not a multiple of 128.
    tr is a multiple of `sub`, or the full row count when everything fits.
    """
    sub = max(8, 32 // itemsize)  # sublanes per packed vreg for this dtype
    C = F
    if F > 0 and F % 128 == 0:
        m = F // 128
        # One sub-row x 128-lane column group is sub*128*itemsize bytes (one
        # fully packed vreg); cap k so a sub-row tile stays on budget.
        max_k = max(1, min(m, tile_bytes // (sub * 128 * itemsize)))
        for k in range(max_k, 0, -1):
            if m % k == 0:
                C = 128 * k
                break
    R = F // C
    rows = B * R
    tr_target = max(1, tile_bytes // (C * itemsize))
    if tr_target >= rows:
        tr = rows                       # full-extent sublane block (always legal)
    else:
        tr = max(sub, (tr_target // sub) * sub)
        if tr >= rows:
            tr = rows
    return C, R, tr


def _drop_path_scale(x, scale):
    """out[b, ...] = x[b, ...] * scale[b], scale shape (B,), via Pallas."""
    B = x.shape[0]
    F = math.prod(x.shape[1:])
    itemsize = jnp.dtype(x.dtype).itemsize
    total_bytes = B * F * itemsize
    bshape = (B,) + (1,) * (x.ndim - 1)

    # Small-input bail-out: a single-step kernel is dominated by launch and
    # pipeline prologue/epilogue; XLA's fused elementwise multiply wins there.
    if total_bytes < _MIN_PALLAS_BYTES or F == 0 or B == 0:
        return x * scale.reshape(bshape)

    tile_bytes, vmem_limit = _device_tile_params()
    C, R, tr = _choose_layout(F, itemsize, B, tile_bytes)
    rows = B * R

    x2d = x.reshape(rows, C)
    # Per-row scale: each sample contributes R identical rows. This side band
    # is <= 1/128 of x's HBM traffic; in the common case R == 1 it is just a
    # reshape (no broadcast materialized).
    if R == 1:
        s2d = scale.reshape(rows, 1)
    else:
        s2d = jnp.broadcast_to(scale.reshape(B, 1), (B, R)).reshape(rows, 1)

    out = pl.pallas_call(
        _drop_path_kernel,
        out_shape=jax.ShapeDtypeStruct((rows, C), x.dtype),
        grid_spec=pltpu.PrefetchScalarGridSpec(
            num_scalar_prefetch=0,
            grid=(pl.cdiv(rows, tr),),
            in_specs=[
                pl.BlockSpec((tr, C), lambda i: (i, 0)),
                pl.BlockSpec((tr, 1), lambda i: (i, 0)),
            ],
            out_specs=pl.BlockSpec((tr, C), lambda i: (i, 0)),
        ),
        # Output reuses x2d's HBM buffer when it can be donated (same shape /
        # dtype). Bytes moved are unchanged but the footprint halves.
        input_output_aliases={0: 0},
        compiler_params=pltpu.CompilerParams(
            dimension_semantics=("parallel",),
            vmem_limit_bytes=vmem_limit,
        ),
    )(x2d, s2d)

    return out.reshape(x.shape)


def drop_path(x, key, drop_prob: float = 0.0, training: bool = False,
              scale_by_keep: bool = True):
    """JAX/Pallas equivalent of the PyTorch drop_path() forward."""
    if drop_prob == 0.0 or not training:
        return x
    if not jnp.issubdtype(x.dtype, jnp.floating):
        raise TypeError(f"drop_path expects a floating-point input, got {x.dtype}")
    keep_prob = 1.0 - drop_prob
    B = x.shape[0]
    # Per-sample keep mask, computed in x.dtype (mirrors PyTorch's
    # x.new_empty(...).bernoulli_().div_()).
    mask = jax.random.bernoulli(key, p=keep_prob, shape=(B,)).astype(x.dtype)
    if keep_prob > 0.0 and scale_by_keep:
        scale = mask / jnp.asarray(keep_prob, dtype=x.dtype)
    else:
        scale = mask
    return _drop_path_scale(x, scale)


class DropPath:
    """Drop paths (Stochastic Depth) per sample."""

    def __init__(self, drop_prob: float = 0.0, scale_by_keep: bool = True):
        self.drop_prob = drop_prob
        self.scale_by_keep = scale_by_keep

    def __call__(self, x, key, training: bool = False):
        return drop_path(x, key, self.drop_prob, training, self.scale_by_keep)


if __name__ == "__main__":
    root = jax.random.PRNGKey(0)
    xkey, mkey = jax.random.split(root)

    drop_prob = 0.25
    keep_prob = 1.0 - drop_prob
    mod = DropPath(drop_prob=drop_prob, scale_by_keep=True)

    def ref_drop_path(x, key):
        m = jax.random.bernoulli(key, p=keep_prob, shape=(x.shape[0],)).astype(x.dtype)
        s = m / jnp.asarray(keep_prob, dtype=x.dtype)
        return x * s.reshape((x.shape[0],) + (1,) * (x.ndim - 1))

    # --- main case: transformer-style (B, N, D), lane-dense Pallas path ---
    x = jax.random.normal(xkey, (4, 256, 384), dtype=jnp.float32)
    y = jax.block_until_ready(mod(x, mkey, training=True))
    assert y.shape == x.shape and y.dtype == x.dtype
    assert jnp.allclose(y, ref_drop_path(x, mkey), atol=1e-6, rtol=1e-6)

    # --- medium case: multi-step grid / R > 1 on v5e & v6e tile sizes ---
    xm = jax.random.normal(xkey, (8, 512, 512), dtype=jnp.float32)
    ym = jax.block_until_ready(mod(xm, mkey, training=True))
    assert jnp.allclose(ym, ref_drop_path(xm, mkey), atol=1e-6, rtol=1e-6)

    # --- bf16 case: dtype-aware sublane packing path ---
    xb = jax.random.normal(xkey, (8, 197, 768), dtype=jnp.bfloat16)
    yb = jax.block_until_ready(mod(xb, mkey, training=True))
    assert jnp.allclose(yb.astype(jnp.float32),
                        ref_drop_path(xb, mkey).astype(jnp.float32),
                        atol=1e-2, rtol=1e-2)

    # --- F % 128 != 0 fallback (full-extent lane block, tail-masked stores) ---
    xf = jax.random.normal(xkey, (4, 300, 300), dtype=jnp.float32)
    yf = jax.block_until_ready(mod(xf, mkey, training=True))
    assert jnp.allclose(yf, ref_drop_path(xf, mkey), atol=1e-6, rtol=1e-6)

    # --- tiny input: jnp bail-out path (no kernel launch) ---
    xs = jax.random.normal(xkey, (2, 8, 32), dtype=jnp.float32)
    ys = jax.block_until_ready(mod(xs, mkey, training=True))
    assert jnp.allclose(ys, ref_drop_path(xs, mkey), atol=1e-6, rtol=1e-6)

    # --- eval mode / drop_prob == 0 -> exact identity, no kernel ---
    assert jnp.array_equal(mod(xs, mkey, training=False), xs)
    assert jnp.array_equal(drop_path(xs, mkey, drop_prob=0.0, training=True), xs)

    print("KERNEL_OK")
</pallas_src>

<mosaic_0001>
module attributes {stable_mosaic.version = 11 : i64} {
  func.func @_drop_path_kernel(%arg0: i32, %arg1: memref<8x49152xf32, #tpu.memory_space<vmem>>, %arg2: memref<8x1xf32, #tpu.memory_space<vmem>>, %arg3: memref<8x49152xf32, #tpu.memory_space<vmem>>) attributes {dimension_semantics = [#tpu.dimension_semantics<parallel>], iteration_bounds = array<i64: 1>, scalar_prefetch = 0 : i64, scratch_operands = 0 : i64, tpu.core_type = #tpu.core_type<tc>, window_params = [{transform_indices = @transform_0, window_bounds = array<i64: 8, 49152>}, {transform_indices = @transform_1, window_bounds = array<i64: 8, 1>}, {transform_indices = @transform_2, window_bounds = array<i64: 8, 49152>}]} {
    %c0 = arith.constant 0 : index
    %c0_0 = arith.constant 0 : index
    %0 = vector.load %arg1[%c0, %c0_0] : memref<8x49152xf32, #tpu.memory_space<vmem>>, vector<8x49152xf32>
    %c0_1 = arith.constant 0 : index
    %c0_2 = arith.constant 0 : index
    %1 = vector.load %arg2[%c0_1, %c0_2] : memref<8x1xf32, #tpu.memory_space<vmem>>, vector<8x1xf32>
    %2 = vector.broadcast %1 : vector<8x1xf32> to vector<8x49152xf32>
    %3 = arith.mulf %0, %2 : vector<8x49152xf32>
    %c0_3 = arith.constant 0 : index
    %c0_4 = arith.constant 0 : index
    %4 = vector.load %arg3[%c0_3, %c0_4] : memref<8x49152xf32, #tpu.memory_space<vmem>>, vector<8x49152xf32>
    tpu.vector_store %arg3[%c0_3, %c0_4], %3 {strides = array<i32>} : memref<8x49152xf32, #tpu.memory_space<vmem>>, vector<8x49152xf32>,
    return
  }
  func.func @transform_0(%arg0: i32) -> (i32, i32) {
    %c0_i32 = arith.constant 0 : i32
    %c0_i32_0 = arith.constant 0 : i32
    return %arg0, %c0_i32 : i32, i32
  }
  func.func @transform_1(%arg0: i32) -> (i32, i32) {
    %c0_i32 = arith.constant 0 : i32
    %c0_i32_0 = arith.constant 0 : i32
    return %arg0, %c0_i32 : i32, i32
  }
  func.func @transform_2(%arg0: i32) -> (i32, i32) {
    %c0_i32 = arith.constant 0 : i32
    %c0_i32_0 = arith.constant 0 : i32
    return %arg0, %c0_i32 : i32, i32
  }
}

</mosaic_0001>

<llo_original>
// kernel: tpu_custom_call.1
$region0: #{tpu_custom_call.1}
  #allocation0 [shape = 'u32[]', space=smem, size = 0x4, offset = 0x4, fixed_abs, tag = 'smem constant byte address 0x4 - core index']
  #allocation1 [shape = 'u32[144,128]{1,0:T(1,128)}', space=vmem, size = 0x12000, scoped, tag = 'internal scratch']
  %s0 = inlined_call_operand.hbm [shape: f32[8,49152], index: 0, kind: input, shape index: {}, may-alias: {0,2}]
  %s1 = inlined_call_operand.vmem [shape: f32[8,1], index: 1, kind: input, shape index: {}]
  %s2 = inlined_call_operand.hbm [shape: f32[8,49152], index: 2, kind: output, shape index: {}, may-alias: {0,2}]
  %s3 = sld [smem:[#allocation0]]
  $region22: #{tpu_custom_call.1} parent=0
    _
  %s5 = ssub.s32 1, %s3
  %s6 = scalar_select 0, %s5, %s3
  $region1: #{tpu_custom_call.1} parent=0
    #allocation2 [shape = 'u8[1572864]{0}', space=vmem, size = 0x180000, scoped, tag = 'input window, operand 0, single buffered']
    #allocation3 [shape = 's32[1]{0}', space=sflag, size = 0x4, scoped, tag = 'scoped memory for tpu_custom_call.1']
    #allocation4 [shape = 's32[1]{0}', space=sflag, size = 0x4, scoped, tag = 'scoped memory for tpu_custom_call.1']
    #allocation5 [shape = 'u8[1572864]{0}', space=vmem, size = 0x180000, scoped, tag = 'output window, operand 0, single buffered']
    %7 = vsyncpa [#allocation3], 0
    %8 = vsyncpa [#allocation4], 0
    // Predicated region
    $region2: #{tpu_custom_call.1} parent=1 // pred_check
      _
    $region3: #{tpu_custom_call.1} parent=1 // pred_check_branch
      %10 = sbr.rel (0) target = $region5
    $region4: #{tpu_custom_call.1} parent=1 // pred_region
      %s12 = ssub.s32 49152, 49152
      %13 = vsyncadd [#allocation3], %s12
      %s15 = sshll.u32 [#allocation2], 4
      %s16 = int_to_ptr.vmem [resolvable:$true] %s15
      %18 = dma.hbm_to_vmem [thread:$0]  %s0, 49152, %s16, [#allocation3]
    $region5: #{tpu_custom_call.1} parent=1 // pred_fallthru
      _
    // Predicated region
    $region6: #{tpu_custom_call.1} parent=1 // pred_check
      _
    $region7: #{tpu_custom_call.1} parent=1 // pred_check_branch
      %20 = sbr.rel (0) target = $region9
    $region8: #{tpu_custom_call.1} parent=1 // pred_region
      _
    $region9: #{tpu_custom_call.1} parent=1 // pred_fallthru
      _
    // Predicated region
    $region10: #{tpu_custom_call.1} parent=1 // pred_check
      _
    $region11: #{tpu_custom_call.1} parent=1 // pred_check_branch
      %22 = sbr.rel (0) target = $region13
    $region12: #{tpu_custom_call.1} parent=1 // pred_region
      %23 = dma.done [#allocation3], 49152
    $region13: #{tpu_custom_call.1} parent=1 // pred_fallthru
      _
    %v24 = vld [vmem:[#allocation2] sm:$0xff]
    %v25 = vld [vmem:[#allocation2 + $0x8] sm:$0xff]
    %v26 = vld [vmem:[#allocation2 + $0x10] sm:$0xff]
    %v27 = vld [vmem:[#allocation2 + $0x18] sm:$0xff]
    %v28 = vld [vmem:[#allocation2 + $0x20] sm:$0xff]
    %v29 = vld [vmem:[#allocation2 + $0x28] sm:$0xff]
    %v30 = vld [vmem:[#allocation2 + $0x30] sm:$0xff]
    %v31 = vld [vmem:[#allocation2 + $0x38] sm:$0xff]
    %v32 = vld [vmem:[#allocation2 + $0x40] sm:$0xff]
    %v33 = vld [vmem:[#allocation2 + $0x48] sm:$0xff]
    %v34 = vld [vmem:[#allocation2 + $0x50] sm:$0xff]
    %v35 = vld [vmem:[#allocation2 + $0x58] sm:$0xff]
    %v36 = vld [vmem:[#allocation2 + $0x60] sm:$0xff]
    %v37 = vld [vmem:[#allocation2 + $0x68] sm:$0xff]
    %v38 = vld [vmem:[#allocation2 + $0x70] sm:$0xff]
    %v39 = vld [vmem:[#allocation2 + $0x78] sm:$0xff]
    %v40 = vld [vmem:[#allocation2 + $0x80] sm:$0xff]
    %v41 = vld [vmem:[#allocation2 + $0x88] sm:$0xff]
    %v42 = vld [vmem:[#allocation2 + $0x90] sm:$0xff]
    %v43 = vld [vmem:[#allocation2 + $0x98] sm:$0xff]
    %v44 = vld [vmem:[#allocation2 + $0xa0] sm:$0xff]
    %v45 = vld [vmem:[#allocation2 + $0xa8] sm:$0xff]
    %v46 = vld [vmem:[#allocation2 + $0xb0] sm:$0xff]
    %v47 = vld [vmem:[#allocation2 + $0xb8] sm:$0xff]
    %v48 = vld [vmem:[#allocation2 + $0xc0] sm:$0xff]
    %v49 = vld [vmem:[#allocation2 + $0xc8] sm:$0xff]
    %v50 = vld [vmem:[#allocation2 + $0xd0] sm:$0xff]
    %v51 = vld [vmem:[#allocation2 + $0xd8] sm:$0xff]
    %v52 = vld [vmem:[#allocation2 + $0xe0] sm:$0xff]
    %v53 = vld [vmem:[#allocation2 + $0xe8] sm:$0xff]
    %v54 = vld [vmem:[#allocation2 + $0xf0] sm:$0xff]
    %v55 = vld [vmem:[#allocation2 + $0xf8] sm:$0xff]
    %v56 = vld [vmem:[#allocation2 + $0x100] sm:$0xff]
    %v57 = vld [vmem:[#allocation2 + $0x108] sm:$0xff]
    %v58 = vld [vmem:[#allocation2 + $0x110] sm:$0xff]
    %v59 = vld [vmem:[#allocation2 + $0x118] sm:$0xff]
    %v60 = vld [vmem:[#allocation2 + $0x120] sm:$0xff]
    %v61 = vld [vmem:[#allocation2 + $0x128] sm:$0xff]
    %v62 = vld [vmem:[#allocation2 + $0x130] sm:$0xff]
    %v63 = vld [vmem:[#allocation2 + $0x138] sm:$0xff]
    %v64 = vld [vmem:[#allocation2 + $0x140] sm:$0xff]
    %v65 = vld [vmem:[#allocation2 + $0x148] sm:$0xff]
    %v66 = vld [vmem:[#allocation2 + $0x150] sm:$0xff]
    %v67 = vld [vmem:[#allocation2 + $0x158] sm:$0xff]
    %v68 = vld [vmem:[#allocation2 + $0x160] sm:$0xff]
    %v69 = vld [vmem:[#allocation2 + $0x168] sm:$0xff]
    %v70 = vld [vmem:[#allocation2 + $0x170] sm:$0xff]
    %v71 = vld [vmem:[#allocation2 + $0x178] sm:$0xff]
    %v72 = vld [vmem:[#allocation2 + $0x180] sm:$0xff]
    %v73 = vld [vmem:[#allocation2 + $0x188] sm:$0xff]
    %v74 = vld [vmem:[#allocation2 + $0x190] sm:$0xff]
    %v75 = vld [vmem:[#allocation2 + $0x198] sm:$0xff]
    %v76 = vld [vmem:[#allocation2 + $0x1a0] sm:$0xff]
    %v77 = vld [vmem:[#allocation2 + $0x1a8] sm:$0xff]
    %v78 = vld [vmem:[#allocation2 + $0x1b0] sm:$0xff]
    %v79 = vld [vmem:[#allocation2 + $0x1b8] sm:$0xff]
    %v80 = vld [vmem:[#allocation2 + $0x1c0] sm:$0xff]
    %v81 = vld [vmem:[#allocation2 + $0x1c8] sm:$0xff]
    %v82 = vld [vmem:[#allocation2 + $0x1d0] sm:$0xff]
    %v83 = vld [vmem:[#allocation2 + $0x1d8] sm:$0xff]
    %v84 = vld [vmem:[#allocation2 + $0x1e0] sm:$0xff]
    %v85 = vld [vmem:[#allocation2 + $0x1e8] sm:$0xff]
    %v86 = vld [vmem:[#allocation2 + $0x1f0] sm:$0xff]
    %v87 = vld [vmem:[#allocation2 + $0x1f8] sm:$0xff]
    %v88 = vld [vmem:[#allocation2 + $0x200] sm:$0xff]
    %v89 = vld [vmem:[#allocation2 + $0x208] sm:$0xff]
    %v90 = vld [vmem:[#allocation2 + $0x210] sm:$0xff]
    %v91 = vld [vmem:[#allocation2 + $0x218] sm:$0xff]
    %v92 = vld [vmem:[#allocation2 + $0x220] sm:$0xff]
    %v93 = vld [vmem:[#allocation2 + $0x228] sm:$0xff]
    %v94 = vld [vmem:[#allocation2 + $0x230] sm:$0xff]
    %v95 = vld [vmem:[#allocation2 + $0x238] sm:$0xff]
    %v96 = vld [vmem:[#allocation2 + $0x240] sm:$0xff]
    %v97 = vld [vmem:[#allocation2 + $0x248] sm:$0xff]
    %v98 = vld [vmem:[#allocation2 + $0x250] sm:$0xff]
    %v99 = vld [vmem:[#allocation2 + $0x258] sm:$0xff]
    %v100 = vld [vmem:[#allocation2 + $0x260] sm:$0xff]
    %v101 = vld [vmem:[#allocation2 + $0x268] sm:$0xff]
    %v102 = vld [vmem:[#allocation2 + $0x270] sm:$0xff]
    %v103 = vld [vmem:[#allocation2 + $0x278] sm:$0xff]
    %v104 = vld [vmem:[#allocation2 + $0x280] sm:$0xff]
    %v105 = vld [vmem:[#allocation2 + $0x288] sm:$0xff]
    %v106 = vld [vmem:[#allocation2 + $0x290] sm:$0xff]
    %v107 = vld [vmem:[#allocation2 + $0x298] sm:$0xff]
    %v108 = vld [vmem:[#allocation2 + $0x2a0] sm:$0xff]
    %v109 = vld [vmem:[#allocation2 + $0x2a8] sm:$0xff]
    %v110 = vld [vmem:[#allocation2 + $0x2b0] sm:$0xff]
    %v111 = vld [vmem:[#allocation2 + $0x2b8] sm:$0xff]
    %v112 = vld [vmem:[#allocation2 + $0x2c0] sm:$0xff]
    %v113 = vld [vmem:[#allocation2 + $0x2c8] sm:$0xff]
    %v114 = vld [vmem:[#allocation2 + $0x2d0] sm:$0xff]
    %v115 = vld [vmem:[#allocation2 + $0x2d8] sm:$0xff]
    %v116 = vld [vmem:[#allocation2 + $0x2e0] sm:$0xff]
    %v117 = vld [vmem:[#allocation2 + $0x2e8] sm:$0xff]
    %v118 = vld [vmem:[#allocation2 + $0x2f0] sm:$0xff]
    %v119 = vld [vmem:[#allocation2 + $0x2f8] sm:$0xff]
    %v120 = vld [vmem:[#allocation2 + $0x300] sm:$0xff]
    %v121 = vld [vmem:[#allocation2 + $0x308] sm:$0xff]
    %v122 = vld [vmem:[#allocation2 + $0x310] sm:$0xff]
    %v123 = vld [vmem:[#allocation2 + $0x318] sm:$0xff]
    %v124 = vld [vmem:[#allocation2 + $0x320] sm:$0xff]
    %v125 = vld [vmem:[#allocation2 + $0x328] sm:$0xff]
    %v126 = vld [vmem:[#allocation2 + $0x330] sm:$0xff]
    %v127 = vld [vmem:[#allocation2 + $0x338] sm:$0xff]
    %v128 = vld [vmem:[#allocation2 + $0x340] sm:$0xff]
    %v129 = vld [vmem:[#allocation2 + $0x348] sm:$0xff]
    %v130 = vld [vmem:[#allocation2 + $0x350] sm:$0xff]
    %v131 = vld [vmem:[#allocation2 + $0x358] sm:$0xff]
    %v132 = vld [vmem:[#allocation2 + $0x360] sm:$0xff]
    %v133 = vld [vmem:[#allocation2 + $0x368] sm:$0xff]
    %v134 = vld [vmem:[#allocation2 + $0x370] sm:$0xff]
    %v135 = vld [vmem:[#allocation2 + $0x378] sm:$0xff]
    %v136 = vld [vmem:[#allocation2 + $0x380] sm:$0xff]
    %v137 = vld [vmem:[#allocation2 + $0x388] sm:$0xff]
    %v138 = vld [vmem:[#allocation2 + $0x390] sm:$0xff]
    %v139 = vld [vmem:[#allocation2 + $0x398] sm:$0xff]
    %v140 = vld [vmem:[#allocation2 + $0x3a0] sm:$0xff]
    %v141 = vld [vmem:[#allocation2 + $0x3a8] sm:$0xff]
    %v142 = vld [vmem:[#allocation2 + $0x3b0] sm:$0xff]
    %v143 = vld [vmem:[#allocation2 + $0x3b8] sm:$0xff]
    %v144 = vld [vmem:[#allocation2 + $0x3c0] sm:$0xff]
    %v145 = vld [vmem:[#allocation2 + $0x3c8] sm:$0xff]
    %v146 = vld [vmem:[#allocation2 + $0x3d0] sm:$0xff]
    %v147 = vld [vmem:[#allocation2 + $0x3d8] sm:$0xff]
    %v148 = vld [vmem:[#allocation2 + $0x3e0] sm:$0xff]
    %v149 = vld [vmem:[#allocation2 + $0x3e8] sm:$0xff]
    %v150 = vld [vmem:[#allocation2 + $0x3f0] sm:$0xff]
    %v151 = vld [vmem:[#allocation2 + $0x3f8] sm:$0xff]
    %v152 = vld [vmem:[#allocation2 + $0x400] sm:$0xff]
    %v153 = vld [vmem:[#allocation2 + $0x408] sm:$0xff]
    %v154 = vld [vmem:[#allocation2 + $0x410] sm:$0xff]
    %v155 = vld [vmem:[#allocation2 + $0x418] sm:$0xff]
    %v156 = vld [vmem:[#allocation2 + $0x420] sm:$0xff]
    %v157 = vld [vmem:[#allocation2 + $0x428] sm:$0xff]
    %v158 = vld [vmem:[#allocation2 + $0x430] sm:$0xff]
    %v159 = vld [vmem:[#allocation2 + $0x438] sm:$0xff]
    %v160 = vld [vmem:[#allocation2 + $0x440] sm:$0xff]
    %v161 = vld [vmem:[#allocation2 + $0x448] sm:$0xff]
    %v162 = vld [vmem:[#allocation2 + $0x450] sm:$0xff]
    %v163 = vld [vmem:[#allocation2 + $0x458] sm:$0xff]
    %v164 = vld [vmem:[#allocation2 + $0x460] sm:$0xff]
    %v165 = vld [vmem:[#allocation2 + $0x468] sm:$0xff]
    %v166 = vld [vmem:[#allocation2 + $0x470] sm:$0xff]
    %v167 = vld [vmem:[#allocation2 + $0x478] sm:$0xff]
    %v168 = vld [vmem:[#allocation2 + $0x480] sm:$0xff]
    %v169 = vld [vmem:[#allocation2 + $0x488] sm:$0xff]
    %v170 = vld [vmem:[#allocation2 + $0x490] sm:$0xff]
    %v171 = vld [vmem:[#allocation2 + $0x498] sm:$0xff]
    %v172 = vld [vmem:[#allocation2 + $0x4a0] sm:$0xff]
    %v173 = vld [vmem:[#allocation2 + $0x4a8] sm:$0xff]
    %v174 = vld [vmem:[#allocation2 + $0x4b0] sm:$0xff]
    %v175 = vld [vmem:[#allocation2 + $0x4b8] sm:$0xff]
    %v176 = vld [vmem:[#allocation2 + $0x4c0] sm:$0xff]
    %v177 = vld [vmem:[#allocation2 + $0x4c8] sm:$0xff]
    %v178 = vld [vmem:[#allocation2 + $0x4d0] sm:$0xff]
    %v179 = vld [vmem:[#allocation2 + $0x4d8] sm:$0xff]
    %v180 = vld [vmem:[#allocation2 + $0x4e0] sm:$0xff]
    %v181 = vld [vmem:[#allocation2 + $0x4e8] sm:$0xff]
    %v182 = vld [vmem:[#allocation2 + $0x4f0] sm:$0xff]
    %v183 = vld [vmem:[#allocation2 + $0x4f8] sm:$0xff]
    %v184 = vld [vmem:[#allocation2 + $0x500] sm:$0xff]
    %v185 = vld [vmem:[#allocation2 + $0x508] sm:$0xff]
    %v186 = vld [vmem:[#allocation2 + $0x510] sm:$0xff]
    %v187 = vld [vmem:[#allocation2 + $0x518] sm:$0xff]
    %v188 = vld [vmem:[#allocation2 + $0x520] sm:$0xff]
    %v189 = vld [vmem:[#allocation2 + $0x528] sm:$0xff]
    %v190 = vld [vmem:[#allocation2 + $0x530] sm:$0xff]
    %v191 = vld [vmem:[#allocation2 + $0x538] sm:$0xff]
    %v192 = vld [vmem:[#allocation2 + $0x540] sm:$0xff]
    %v193 = vld [vmem:[#allocation2 + $0x548] sm:$0xff]
    %v194 = vld [vmem:[#allocation2 + $0x550] sm:$0xff]
    %v195 = vld [vmem:[#allocation2 + $0x558] sm:$0xff]
    %v196 = vld [vmem:[#allocation2 + $0x560] sm:$0xff]
    %v197 = vld [vmem:[#allocation2 + $0x568] sm:$0xff]
    %v198 = vld [vmem:[#allocation2 + $0x570] sm:$0xff]
    %v199 = vld [vmem:[#allocation2 + $0x578] sm:$0xff]
    %v200 = vld [vmem:[#allocation2 + $0x580] sm:$0xff]
    %v201 = vld [vmem:[#allocation2 + $0x588] sm:$0xff]
    %v202 = vld [vmem:[#allocation2 + $0x590] sm:$0xff]
    %v203 = vld [vmem:[#allocation2 + $0x598] sm:$0xff]
    %v204 = vld [vmem:[#allocation2 + $0x5a0] sm:$0xff]
    %v205 = vld [vmem:[#allocation2 + $0x5a8] sm:$0xff]
    %v206 = vld [vmem:[#allocation2 + $0x5b0] sm:$0xff]
    %v207 = vld [vmem:[#allocation2 + $0x5b8] sm:$0xff]
    %v208 = vld [vmem:[#allocation2 + $0x5c0] sm:$0xff]
    %v209 = vld [vmem:[#allocation2 + $0x5c8] sm:$0xff]
    %v210 = vld [vmem:[#allocation2 + $0x5d0] sm:$0xff]
    %v211 = vld [vmem:[#allocation2 + $0x5d8] sm:$0xff]
    %v212 = vld [vmem:[#allocation2 + $0x5e0] sm:$0xff]
    %v213 = vld [vmem:[#allocation2 + $0x5e8] sm:$0xff]
    %v214 = vld [vmem:[#allocation2 + $0x5f0] sm:$0xff]
    %v215 = vld [vmem:[#allocation2 + $0x5f8] sm:$0xff]
    %v216 = vld [vmem:[#allocation2 + $0x600] sm:$0xff]
    %v217 = vld [vmem:[#allocation2 + $0x608] sm:$0xff]
    %v218 = vld [vmem:[#allocation2 + $0x610] sm:$0xff]
    %v219 = vld [vmem:[#allocation2 + $0x618] sm:$0xff]
    %v220 = vld [vmem:[#allocation2 + $0x620] sm:$0xff]
    %v221 = vld [vmem:[#allocation2 + $0x628] sm:$0xff]
    %v222 = vld [vmem:[#allocation2 + $0x630] sm:$0xff]
    %v223 = vld [vmem:[#allocation2 + $0x638] sm:$0xff]
    %v224 = vld [vmem:[#allocation2 + $0x640] sm:$0xff]
    %v225 = vld [vmem:[#allocation2 + $0x648] sm:$0xff]
    %v226 = vld [vmem:[#allocation2 + $0x650] sm:$0xff]
    %v227 = vld [vmem:[#allocation2 + $0x658] sm:$0xff]
    %v228 = vld [vmem:[#allocation2 + $0x660] sm:$0xff]
    %v229 = vld [vmem:[#allocation2 + $0x668] sm:$0xff]
    %v230 = vld [vmem:[#allocation2 + $0x670] sm:$0xff]
    %v231 = vld [vmem:[#allocation2 + $0x678] sm:$0xff]
    %v232 = vld [vmem:[#allocation2 + $0x680] sm:$0xff]
    %v233 = vld [vmem:[#allocation2 + $0x688] sm:$0xff]
    %v234 = vld [vmem:[#allocation2 + $0x690] sm:$0xff]
    %v235 = vld [vmem:[#allocation2 + $0x698] sm:$0xff]
    %v236 = vld [vmem:[#allocation2 + $0x6a0] sm:$0xff]
    %v237 = vld [vmem:[#allocation2 + $0x6a8] sm:$0xff]
    %v238 = vld [vmem:[#allocation2 + $0x6b0] sm:$0xff]
    %v239 = vld [vmem:[#allocation2 + $0x6b8] sm:$0xff]
    %v240 = vld [vmem:[#allocation2 + $0x6c0] sm:$0xff]
    %v241 = vld [vmem:[#allocation2 + $0x6c8] sm:$0xff]
    %v242 = vld [vmem:[#allocation2 + $0x6d0] sm:$0xff]
    %v243 = vld [vmem:[#allocation2 + $0x6d8] sm:$0xff]
    %v244 = vld [vmem:[#allocation2 + $0x6e0] sm:$0xff]
    %v245 = vld [vmem:[#allocation2 + $0x6e8] sm:$0xff]
    %v246 = vld [vmem:[#allocation2 + $0x6f0] sm:$0xff]
    %v247 = vld [vmem:[#allocation2 + $0x6f8] sm:$0xff]
    %v248 = vld [vmem:[#allocation2 + $0x700] sm:$0xff]
    %v249 = vld [vmem:[#allocation2 + $0x708] sm:$0xff]
    %v250 = vld [vmem:[#allocation2 + $0x710] sm:$0xff]
    %v251 = vld [vmem:[#allocation2 + $0x718] sm:$0xff]
    %v252 = vld [vmem:[#allocation2 + $0x720] sm:$0xff]
    %v253 = vld [vmem:[#allocation2 + $0x728] sm:$0xff]
    %v254 = vld [vmem:[#allocation2 + $0x730] sm:$0xff]
    %v255 = vld [vmem:[#allocation2 + $0x738] sm:$0xff]
    %v256 = vld [vmem:[#allocation2 + $0x740] sm:$0xff]
    %v257 = vld [vmem:[#allocation2 + $0x748] sm:$0xff]
    %v258 = vld [vmem:[#allocation2 + $0x750] sm:$0xff]
    %v259 = vld [vmem:[#allocation2 + $0x758] sm:$0xff]
    %v260 = vld [vmem:[#allocation2 + $0x760] sm:$0xff]
    %v261 = vld [vmem:[#allocation2 + $0x768] sm:$0xff]
    %v262 = vld [vmem:[#allocation2 + $0x770] sm:$0xff]
    %v263 = vld [vmem:[#allocation2 + $0x778] sm:$0xff]
    %v264 = vld [vmem:[#allocation2 + $0x780] sm:$0xff]
    %v265 = vld [vmem:[#allocation2 + $0x788] sm:$0xff]
    %v266 = vld [vmem:[#allocation2 + $0x790] sm:$0xff]
    %v267 = vld [vmem:[#allocation2 + $0x798] sm:$0xff]
    %v268 = vld [vmem:[#allocation2 + $0x7a0] sm:$0xff]
    %v269 = vld [vmem:[#allocation2 + $0x7a8] sm:$0xff]
    %v270 = vld [vmem:[#allocation2 + $0x7b0] sm:$0xff]
    %v271 = vld [vmem:[#allocation2 + $0x7b8] sm:$0xff]
    %v272 = vld [vmem:[#allocation2 + $0x7c0] sm:$0xff]
    %v273 = vld [vmem:[#allocation2 + $0x7c8] sm:$0xff]
    %v274 = vld [vmem:[#allocation2 + $0x7d0] sm:$0xff]
    %v275 = vld [vmem:[#allocation2 + $0x7d8] sm:$0xff]
    %v276 = vld [vmem:[#allocation2 + $0x7e0] sm:$0xff]
    %v277 = vld [vmem:[#allocation2 + $0x7e8] sm:$0xff]
    %v278 = vld [vmem:[#allocation2 + $0x7f0] sm:$0xff]
    %v279 = vld [vmem:[#allocation2 + $0x7f8] sm:$0xff]
    %v280 = vld [vmem:[#allocation2 + $0x800] sm:$0xff]
    %v281 = vld [vmem:[#allocation2 + $0x808] sm:$0xff]
    %v282 = vld [vmem:[#allocation2 + $0x810] sm:$0xff]
    %v283 = vld [vmem:[#allocation2 + $0x818] sm:$0xff]
    %v284 = vld [vmem:[#allocation2 + $0x820] sm:$0xff]
    %v285 = vld [vmem:[#allocation2 + $0x828] sm:$0xff]
    %v286 = vld [vmem:[#allocation2 + $0x830] sm:$0xff]
    %v287 = vld [vmem:[#allocation2 + $0x838] sm:$0xff]
    %v288 = vld [vmem:[#allocation2 + $0x840] sm:$0xff]
    %v289 = vld [vmem:[#allocation2 + $0x848] sm:$0xff]
    %v290 = vld [vmem:[#allocation2 + $0x850] sm:$0xff]
    %v291 = vld [vmem:[#allocation2 + $0x858] sm:$0xff]
    %v292 = vld [vmem:[#allocation2 + $0x860] sm:$0xff]
    %v293 = vld [vmem:[#allocation2 + $0x868] sm:$0xff]
    %v294 = vld [vmem:[#allocation2 + $0x870] sm:$0xff]
    %v295 = vld [vmem:[#allocation2 + $0x878] sm:$0xff]
    %v296 = vld [vmem:[#allocation2 + $0x880] sm:$0xff]
    %v297 = vld [vmem:[#allocation2 + $0x888] sm:$0xff]
    %v298 = vld [vmem:[#allocation2 + $0x890] sm:$0xff]
    %v299 = vld [vmem:[#allocation2 + $0x898] sm:$0xff]
    %v300 = vld [vmem:[#allocation2 + $0x8a0] sm:$0xff]
    %v301 = vld [vmem:[#allocation2 + $0x8a8] sm:$0xff]
    %v302 = vld [vmem:[#allocation2 + $0x8b0] sm:$0xff]
    %v303 = vld [vmem:[#allocation2 + $0x8b8] sm:$0xff]
    %v304 = vld [vmem:[#allocation2 + $0x8c0] sm:$0xff]
    %v305 = vld [vmem:[#allocation2 + $0x8c8] sm:$0xff]
    %v306 = vld [vmem:[#allocation2 + $0x8d0] sm:$0xff]
    %v307 = vld [vmem:[#allocation2 + $0x8d8] sm:$0xff]
    %v308 = vld [vmem:[#allocation2 + $0x8e0] sm:$0xff]
    %v309 = vld [vmem:[#allocation2 + $0x8e8] sm:$0xff]
    %v310 = vld [vmem:[#allocation2 + $0x8f0] sm:$0xff]
    %v311 = vld [vmem:[#allocation2 + $0x8f8] sm:$0xff]
    %v312 = vld [vmem:[#allocation2 + $0x900] sm:$0xff]
    %v313 = vld [vmem:[#allocation2 + $0x908] sm:$0xff]
    %v314 = vld [vmem:[#allocation2 + $0x910] sm:$0xff]
    %v315 = vld [vmem:[#allocation2 + $0x918] sm:$0xff]
    %v316 = vld [vmem:[#allocation2 + $0x920] sm:$0xff]
    %v317 = vld [vmem:[#allocation2 + $0x928] sm:$0xff]
    %v318 = vld [vmem:[#allocation2 + $0x930] sm:$0xff]
    %v319 = vld [vmem:[#allocation2 + $0x938] sm:$0xff]
    %v320 = vld [vmem:[#allocation2 + $0x940] sm:$0xff]
    %v321 = vld [vmem:[#allocation2 + $0x948] sm:$0xff]
    %v322 = vld [vmem:[#allocation2 + $0x950] sm:$0xff]
    %v323 = vld [vmem:[#allocation2 + $0x958] sm:$0xff]
    %v324 = vld [vmem:[#allocation2 + $0x960] sm:$0xff]
    %v325 = vld [vmem:[#allocation2 + $0x968] sm:$0xff]
    %v326 = vld [vmem:[#allocation2 + $0x970] sm:$0xff]
    %v327 = vld [vmem:[#allocation2 + $0x978] sm:$0xff]
    %v328 = vld [vmem:[#allocation2 + $0x980] sm:$0xff]
    %v329 = vld [vmem:[#allocation2 + $0x988] sm:$0xff]
    %v330 = vld [vmem:[#allocation2 + $0x990] sm:$0xff]
    %v331 = vld [vmem:[#allocation2 + $0x998] sm:$0xff]
    %v332 = vld [vmem:[#allocation2 + $0x9a0] sm:$0xff]
    %v333 = vld [vmem:[#allocation2 + $0x9a8] sm:$0xff]
    %v334 = vld [vmem:[#allocation2 + $0x9b0] sm:$0xff]
    %v335 = vld [vmem:[#allocation2 + $0x9b8] sm:$0xff]
    %v336 = vld [vmem:[#allocation2 + $0x9c0] sm:$0xff]
    %v337 = vld [vmem:[#allocation2 + $0x9c8] sm:$0xff]
    %v338 = vld [vmem:[#allocation2 + $0x9d0] sm:$0xff]
    %v339 = vld [vmem:[#allocation2 + $0x9d8] sm:$0xff]
    %v340 = vld [vmem:[#allocation2 + $0x9e0] sm:$0xff]
    %v341 = vld [vmem:[#allocation2 + $0x9e8] sm:$0xff]
    %v342 = vld [vmem:[#allocation2 + $0x9f0] sm:$0xff]
    %v343 = vld [vmem:[#allocation2 + $0x9f8] sm:$0xff]
    %v344 = vld [vmem:[#allocation2 + $0xa00] sm:$0xff]
    %v345 = vld [vmem:[#allocation2 + $0xa08] sm:$0xff]
    %v346 = vld [vmem:[#allocation2 + $0xa10] sm:$0xff]
    %v347 = vld [vmem:[#allocation2 + $0xa18] sm:$0xff]
    %v348 = vld [vmem:[#allocation2 + $0xa20] sm:$0xff]
    %v349 = vld [vmem:[#allocation2 + $0xa28] sm:$0xff]
    %v350 = vld [vmem:[#allocation2 + $0xa30] sm:$0xff]
    %v351 = vld [vmem:[#allocation2 + $0xa38] sm:$0xff]
    %v352 = vld [vmem:[#allocation2 + $0xa40] sm:$0xff]
    %v353 = vld [vmem:[#allocation2 + $0xa48] sm:$0xff]
    %v354 = vld [vmem:[#allocation2 + $0xa50] sm:$0xff]
    %v355 = vld [vmem:[#allocation2 + $0xa58] sm:$0xff]
    %v356 = vld [vmem:[#allocation2 + $0xa60] sm:$0xff]
    %v357 = vld [vmem:[#allocation2 + $0xa68] sm:$0xff]
    %v358 = vld [vmem:[#allocation2 + $0xa70] sm:$0xff]
    %v359 = vld [vmem:[#allocation2 + $0xa78] sm:$0xff]
    %v360 = vld [vmem:[#allocation2 + $0xa80] sm:$0xff]
    %v361 = vld [vmem:[#allocation2 + $0xa88] sm:$0xff]
    %v362 = vld [vmem:[#allocation2 + $0xa90] sm:$0xff]
    %v363 = vld [vmem:[#allocation2 + $0xa98] sm:$0xff]
    %v364 = vld [vmem:[#allocation2 + $0xaa0] sm:$0xff]
    %v365 = vld [vmem:[#allocation2 + $0xaa8] sm:$0xff]
    %v366 = vld [vmem:[#allocation2 + $0xab0] sm:$0xff]
    %v367 = vld [vmem:[#allocation2 + $0xab8] sm:$0xff]
    %v368 = vld [vmem:[#allocation2 + $0xac0] sm:$0xff]
    %v369 = vld [vmem:[#allocation2 + $0xac8] sm:$0xff]
    %v370 = vld [vmem:[#allocation2 + $0xad0] sm:$0xff]
    %v371 = vld [vmem:[#allocation2 + $0xad8] sm:$0xff]
    %v372 = vld [vmem:[#allocation2 + $0xae0] sm:$0xff]
    %v373 = vld [vmem:[#allocation2 + $0xae8] sm:$0xff]
    %v374 = vld [vmem:[#allocation2 + $0xaf0] sm:$0xff]
    %v375 = vld [vmem:[#allocation2 + $0xaf8] sm:$0xff]
    %v376 = vld [vmem:[#allocation2 + $0xb00] sm:$0xff]
    %v377 = vld [vmem:[#allocation2 + $0xb08] sm:$0xff]
    %v378 = vld [vmem:[#allocation2 + $0xb10] sm:$0xff]
    %v379 = vld [vmem:[#allocation2 + $0xb18] sm:$0xff]
    %v380 = vld [vmem:[#allocation2 + $0xb20] sm:$0xff]
    %v381 = vld [vmem:[#allocation2 + $0xb28] sm:$0xff]
    %v382 = vld [vmem:[#allocation2 + $0xb30] sm:$0xff]
    %v383 = vld [vmem:[#allocation2 + $0xb38] sm:$0xff]
    %v384 = vld [vmem:[#allocation2 + $0xb40] sm:$0xff]
    %v385 = vld [vmem:[#allocation2 + $0xb48] sm:$0xff]
    %v386 = vld [vmem:[#allocation2 + $0xb50] sm:$0xff]
    %v387 = vld [vmem:[#allocation2 + $0xb58] sm:$0xff]
    %v388 = vld [vmem:[#allocation2 + $0xb60] sm:$0xff]
    %v389 = vld [vmem:[#allocation2 + $0xb68] sm:$0xff]
    %v390 = vld [vmem:[#allocation2 + $0xb70] sm:$0xff]
    %v391 = vld [vmem:[#allocation2 + $0xb78] sm:$0xff]
    %v392 = vld [vmem:[#allocation2 + $0xb80] sm:$0xff]
    %v393 = vld [vmem:[#allocation2 + $0xb88] sm:$0xff]
    %v394 = vld [vmem:[#allocation2 + $0xb90] sm:$0xff]
    %v395 = vld [vmem:[#allocation2 + $0xb98] sm:$0xff]
    %v396 = vld [vmem:[#allocation2 + $0xba0] sm:$0xff]
    %v397 = vld [vmem:[#allocation2 + $0xba8] sm:$0xff]
    %v398 = vld [vmem:[#allocation2 + $0xbb0] sm:$0xff]
    %v399 = vld [vmem:[#allocation2 + $0xbb8] sm:$0xff]
    %v400 = vld [vmem:[#allocation2 + $0xbc0] sm:$0xff]
    %v401 = vld [vmem:[#allocation2 + $0xbc8] sm:$0xff]
    %v402 = vld [vmem:[#allocation2 + $0xbd0] sm:$0xff]
    %v403 = vld [vmem:[#allocation2 + $0xbd8] sm:$0xff]
    %v404 = vld [vmem:[#allocation2 + $0xbe0] sm:$0xff]
    %v405 = vld [vmem:[#allocation2 + $0xbe8] sm:$0xff]
    %v406 = vld [vmem:[#allocation2 + $0xbf0] sm:$0xff]
    %v407 = vld [vmem:[#allocation2 + $0xbf8] sm:$0xff]
    %v408 = vld [vmem:[%s1] sm:$0xff]
    %410 = vset.pattern.permute.xlu0 0
    %411 = vperm.xlu0 %410, %v408
    %v412 = vpop.permute.xlu0 %411
    %v414 = vmul.f32 %v24, %v412
    %v415 = vmul.f32 %v25, %v412
    %v416 = vmul.f32 %v26, %v412
    %v417 = vmul.f32 %v27, %v412
    %v418 = vmul.f32 %v28, %v412
    %v419 = vmul.f32 %v29, %v412
    %v420 = vmul.f32 %v30, %v412
    %v421 = vmul.f32 %v31, %v412
    %v422 = vmul.f32 %v32, %v412
    %v423 = vmul.f32 %v33, %v412
    %v424 = vmul.f32 %v34, %v412
    %v425 = vmul.f32 %v35, %v412
    %v426 = vmul.f32 %v36, %v412
    %v427 = vmul.f32 %v37, %v412
    %v428 = vmul.f32 %v38, %v412
    %v429 = vmul.f32 %v39, %v412
    %v430 = vmul.f32 %v40, %v412
    %v431 = vmul.f32 %v41, %v412
    %v432 = vmul.f32 %v42, %v412
    %v433 = vmul.f32 %v43, %v412
    %v434 = vmul.f32 %v44, %v412
    %v435 = vmul.f32 %v45, %v412
    %v436 = vmul.f32 %v46, %v412
    %v437 = vmul.f32 %v47, %v412
    %v438 = vmul.f32 %v48, %v412
    %v439 = vmul.f32 %v49, %v412
    %v440 = vmul.f32 %v50, %v412
    %v441 = vmul.f32 %v51, %v412
    %v442 = vmul.f32 %v52, %v412
    %v443 = vmul.f32 %v53, %v412
    %v444 = vmul.f32 %v54, %v412
    %v445 = vmul.f32 %v55, %v412
    %v446 = vmul.f32 %v56, %v412
    %v447 = vmul.f32 %v57, %v412
    %v448 = vmul.f32 %v58, %v412
    %v449 = vmul.f32 %v59, %v412
    %v450 = vmul.f32 %v60, %v412
    %v451 = vmul.f32 %v61, %v412
    %v452 = vmul.f32 %v62, %v412
    %v453 = vmul.f32 %v63, %v412
    %v454 = vmul.f32 %v64, %v412
    %v455 = vmul.f32 %v65, %v412
    %v456 = vmul.f32 %v66, %v412
    %v457 = vmul.f32 %v67, %v412
    %v458 = vmul.f32 %v68, %v412
    %v459 = vmul.f32 %v69, %v412
    %v460 = vmul.f32 %v70, %v412
    %v461 = vmul.f32 %v71, %v412
    %v462 = vmul.f32 %v72, %v412
    %v463 = vmul.f32 %v73, %v412
    %v464 = vmul.f32 %v74, %v412
    %v465 = vmul.f32 %v75, %v412
    %v466 = vmul.f32 %v76, %v412
    %v467 = vmul.f32 %v77, %v412
    %v468 = vmul.f32 %v78, %v412
    %v469 = vmul.f32 %v79, %v412
    %v470 = vmul.f32 %v80, %v412
    %v471 = vmul.f32 %v81, %v412
    %v472 = vmul.f32 %v82, %v412
    %v473 = vmul.f32 %v83, %v412
    %v474 = vmul.f32 %v84, %v412
    %v475 = vmul.f32 %v85, %v412
    %v476 = vmul.f32 %v86, %v412
    %v477 = vmul.f32 %v87, %v412
    %v478 = vmul.f32 %v88, %v412
    %v479 = vmul.f32 %v89, %v412
    %v480 = vmul.f32 %v90, %v412
    %v481 = vmul.f32 %v91, %v412
    %v482 = vmul.f32 %v92, %v412
    %v483 = vmul.f32 %v93, %v412
    %v484 = vmul.f32 %v94, %v412
    %v485 = vmul.f32 %v95, %v412
    %v486 = vmul.f32 %v96, %v412
    %v487 = vmul.f32 %v97, %v412
    %v488 = vmul.f32 %v98, %v412
    %v489 = vmul.f32 %v99, %v412
    %v490 = vmul.f32 %v100, %v412
    %v491 = vmul.f32 %v101, %v412
    %v492 = vmul.f32 %v102, %v412
    %v493 = vmul.f32 %v103, %v412
    %v494 = vmul.f32 %v104, %v412
    %v495 = vmul.f32 %v105, %v412
    %v496 = vmul.f32 %v106, %v412
    %v497 = vmul.f32 %v107, %v412
    %v498 = vmul.f32 %v108, %v412
    %v499 = vmul.f32 %v109, %v412
    %v500 = vmul.f32 %v110, %v412
    %v501 = vmul.f32 %v111, %v412
    %v502 = vmul.f32 %v112, %v412
    %v503 = vmul.f32 %v113, %v412
    %v504 = vmul.f32 %v114, %v412
    %v505 = vmul.f32 %v115, %v412
    %v506 = vmul.f32 %v116, %v412
    %v507 = vmul.f32 %v117, %v412
    %v508 = vmul.f32 %v118, %v412
    %v509 = vmul.f32 %v119, %v412
    %v510 = vmul.f32 %v120, %v412
    %v511 = vmul.f32 %v121, %v412
    %v512 = vmul.f32 %v122, %v412
    %v513 = vmul.f32 %v123, %v412
    %v514 = vmul.f32 %v124, %v412
    %v515 = vmul.f32 %v125, %v412
    %v516 = vmul.f32 %v126, %v412
    %v517 = vmul.f32 %v127, %v412
    %v518 = vmul.f32 %v128, %v412
    %v519 = vmul.f32 %v129, %v412
    %v520 = vmul.f32 %v130, %v412
    %v521 = vmul.f32 %v131, %v412
    %v522 = vmul.f32 %v132, %v412
    %v523 = vmul.f32 %v133, %v412
    %v524 = vmul.f32 %v134, %v412
    %v525 = vmul.f32 %v135, %v412
    %v526 = vmul.f32 %v136, %v412
    %v527 = vmul.f32 %v137, %v412
    %v528 = vmul.f32 %v138, %v412
    %v529 = vmul.f32 %v139, %v412
    %v530 = vmul.f32 %v140, %v412
    %v531 = vmul.f32 %v141, %v412
    %v532 = vmul.f32 %v142, %v412
    %v533 = vmul.f32 %v143, %v412
    %v534 = vmul.f32 %v144, %v412
    %v535 = vmul.f32 %v145, %v412
    %v536 = vmul.f32 %v146, %v412
    %v537 = vmul.f32 %v147, %v412
    %v538 = vmul.f32 %v148, %v412
    %v539 = vmul.f32 %v149, %v412
    %v540 = vmul.f32 %v150, %v412
    %v541 = vmul.f32 %v151, %v412
    %v542 = vmul.f32 %v152, %v412
    %v543 = vmul.f32 %v153, %v412
    %v544 = vmul.f32 %v154, %v412
    %v545 = vmul.f32 %v155, %v412
    %v546 = vmul.f32 %v156, %v412
    %v547 = vmul.f32 %v157, %v412
    %v548 = vmul.f32 %v158, %v412
    %v549 = vmul.f32 %v159, %v412
    %v550 = vmul.f32 %v160, %v412
    %v551 = vmul.f32 %v161, %v412
    %v552 = vmul.f32 %v162, %v412
    %v553 = vmul.f32 %v163, %v412
    %v554 = vmul.f32 %v164, %v412
    %v555 = vmul.f32 %v165, %v412
    %v556 = vmul.f32 %v166, %v412
    %v557 = vmul.f32 %v167, %v412
    %v558 = vmul.f32 %v168, %v412
    %v559 = vmul.f32 %v169, %v412
    %v560 = vmul.f32 %v170, %v412
    %v561 = vmul.f32 %v171, %v412
    %v562 = vmul.f32 %v172, %v412
    %v563 = vmul.f32 %v173, %v412
    %v564 = vmul.f32 %v174, %v412
    %v565 = vmul.f32 %v175, %v412
    %v566 = vmul.f32 %v176, %v412
    %v567 = vmul.f32 %v177, %v412
    %v568 = vmul.f32 %v178, %v412
    %v569 = vmul.f32 %v179, %v412
    %v570 = vmul.f32 %v180, %v412
    %v571 = vmul.f32 %v181, %v412
    %v572 = vmul.f32 %v182, %v412
    %v573 = vmul.f32 %v183, %v412
    %v574 = vmul.f32 %v184, %v412
    %v575 = vmul.f32 %v185, %v412
    %v576 = vmul.f32 %v186, %v412
    %v577 = vmul.f32 %v187, %v412
    %v578 = vmul.f32 %v188, %v412
    %v579 = vmul.f32 %v189, %v412
    %v580 = vmul.f32 %v190, %v412
    %v581 = vmul.f32 %v191, %v412
    %v582 = vmul.f32 %v192, %v412
    %v583 = vmul.f32 %v193, %v412
    %v584 = vmul.f32 %v194, %v412
    %v585 = vmul.f32 %v195, %v412
    %v586 = vmul.f32 %v196, %v412
    %v587 = vmul.f32 %v197, %v412
    %v588 = vmul.f32 %v198, %v412
    %v589 = vmul.f32 %v199, %v412
    %v590 = vmul.f32 %v200, %v412
    %v591 = vmul.f32 %v201, %v412
    %v592 = vmul.f32 %v202, %v412
    %v593 = vmul.f32 %v203, %v412
    %v594 = vmul.f32 %v204, %v412
    %v595 = vmul.f32 %v205, %v412
    %v596 = vmul.f32 %v206, %v412
    %v597 = vmul.f32 %v207, %v412
    %v598 = vmul.f32 %v208, %v412
    %v599 = vmul.f32 %v209, %v412
    %v600 = vmul.f32 %v210, %v412
    %v601 = vmul.f32 %v211, %v412
    %v602 = vmul.f32 %v212, %v412
    %v603 = vmul.f32 %v213, %v412
    %v604 = vmul.f32 %v214, %v412
    %v605 = vmul.f32 %v215, %v412
    %v606 = vmul.f32 %v216, %v412
    %v607 = vmul.f32 %v217, %v412
    %v608 = vmul.f32 %v218, %v412
    %v609 = vmul.f32 %v219, %v412
    %v610 = vmul.f32 %v220, %v412
    %v611 = vmul.f32 %v221, %v412
    %v612 = vmul.f32 %v222, %v412
    %v613 = vmul.f32 %v223, %v412
    %v614 = vmul.f32 %v224, %v412
    %v615 = vmul.f32 %v225, %v412
    %v616 = vmul.f32 %v226, %v412
    %v617 = vmul.f32 %v227, %v412
    %v618 = vmul.f32 %v228, %v412
    %v619 = vmul.f32 %v229, %v412
    %v620 = vmul.f32 %v230, %v412
    %v621 = vmul.f32 %v231, %v412
    %v622 = vmul.f32 %v232, %v412
    %v623 = vmul.f32 %v233, %v412
    %v624 = vmul.f32 %v234, %v412
    %v625 = vmul.f32 %v235, %v412
    %v626 = vmul.f32 %v236, %v412
    %v627 = vmul.f32 %v237, %v412
    %v628 = vmul.f32 %v238, %v412
    %v629 = vmul.f32 %v239, %v412
    %v630 = vmul.f32 %v240, %v412
    %v631 = vmul.f32 %v241, %v412
    %v632 = vmul.f32 %v242, %v412
    %v633 = vmul.f32 %v243, %v412
    %v634 = vmul.f32 %v244, %v412
    %v635 = vmul.f32 %v245, %v412
    %v636 = vmul.f32 %v246, %v412
    %v637 = vmul.f32 %v247, %v412
    %v638 = vmul.f32 %v248, %v412
    %v639 = vmul.f32 %v249, %v412
    %v640 = vmul.f32 %v250, %v412
    %v641 = vmul.f32 %v251, %v412
    %v642 = vmul.f32 %v252, %v412
    %v643 = vmul.f32 %v253, %v412
    %v644 = vmul.f32 %v254, %v412
    %v645 = vmul.f32 %v255, %v412
    %v646 = vmul.f32 %v256, %v412
    %v647 = vmul.f32 %v257, %v412
    %v648 = vmul.f32 %v258, %v412
    %v649 = vmul.f32 %v259, %v412
    %v650 = vmul.f32 %v260, %v412
    %v651 = vmul.f32 %v261, %v412
    %v652 = vmul.f32 %v262, %v412
    %v653 = vmul.f32 %v263, %v412
    %v654 = vmul.f32 %v264, %v412
    %v655 = vmul.f32 %v265, %v412
    %v656 = vmul.f32 %v266, %v412
    %v657 = vmul.f32 %v267, %v412
    %v658 = vmul.f32 %v268, %v412
    %v659 = vmul.f32 %v269, %v412
    %v660 = vmul.f32 %v270, %v412
    %v661 = vmul.f32 %v271, %v412
    %v662 = vmul.f32 %v272, %v412
    %v663 = vmul.f32 %v273, %v412
    %v664 = vmul.f32 %v274, %v412
    %v665 = vmul.f32 %v275, %v412
    %v666 = vmul.f32 %v276, %v412
    %v667 = vmul.f32 %v277, %v412
    %v668 = vmul.f32 %v278, %v412
    %v669 = vmul.f32 %v279, %v412
    %v670 = vmul.f32 %v280, %v412
    %v671 = vmul.f32 %v281, %v412
    %v672 = vmul.f32 %v282, %v412
    %v673 = vmul.f32 %v283, %v412
    %v674 = vmul.f32 %v284, %v412
    %v675 = vmul.f32 %v285, %v412
    %v676 = vmul.f32 %v286, %v412
    %v677 = vmul.f32 %v287, %v412
    %v678 = vmul.f32 %v288, %v412
    %v679 = vmul.f32 %v289, %v412
    %v680 = vmul.f32 %v290, %v412
    %v681 = vmul.f32 %v291, %v412
    %v682 = vmul.f32 %v292, %v412
    %v683 = vmul.f32 %v293, %v412
    %v684 = vmul.f32 %v294, %v412
    %v685 = vmul.f32 %v295, %v412
    %v686 = vmul.f32 %v296, %v412
    %v687 = vmul.f32 %v297, %v412
    %v688 = vmul.f32 %v298, %v412
    %v689 = vmul.f32 %v299, %v412
    %v690 = vmul.f32 %v300, %v412
    %v691 = vmul.f32 %v301, %v412
    %v692 = vmul.f32 %v302, %v412
    %v693 = vmul.f32 %v303, %v412
    %v694 = vmul.f32 %v304, %v412
    %v695 = vmul.f32 %v305, %v412
    %v696 = vmul.f32 %v306, %v412
    %v697 = vmul.f32 %v307, %v412
    %v698 = vmul.f32 %v308, %v412
    %v699 = vmul.f32 %v309, %v412
    %v700 = vmul.f32 %v310, %v412
    %v701 = vmul.f32 %v311, %v412
    %v702 = vmul.f32 %v312, %v412
    %v703 = vmul.f32 %v313, %v412
    %v704 = vmul.f32 %v314, %v412
    %v705 = vmul.f32 %v315, %v412
    %v706 = vmul.f32 %v316, %v412
    %v707 = vmul.f32 %v317, %v412
    %v708 = vmul.f32 %v318, %v412
    %v709 = vmul.f32 %v319, %v412
    %v710 = vmul.f32 %v320, %v412
    %v711 = vmul.f32 %v321, %v412
    %v712 = vmul.f32 %v322, %v412
    %v713 = vmul.f32 %v323, %v412
    %v714 = vmul.f32 %v324, %v412
    %v715 = vmul.f32 %v325, %v412
    %v716 = vmul.f32 %v326, %v412
    %v717 = vmul.f32 %v327, %v412
    %v718 = vmul.f32 %v328, %v412
    %v719 = vmul.f32 %v329, %v412
    %v720 = vmul.f32 %v330, %v412
    %v721 = vmul.f32 %v331, %v412
    %v722 = vmul.f32 %v332, %v412
    %v723 = vmul.f32 %v333, %v412
    %v724 = vmul.f32 %v334, %v412
    %v725 = vmul.f32 %v335, %v412
    %v726 = vmul.f32 %v336, %v412
    %v727 = vmul.f32 %v337, %v412
    %v728 = vmul.f32 %v338, %v412
    %v729 = vmul.f32 %v339, %v412
    %v730 = vmul.f32 %v340, %v412
    %v731 = vmul.f32 %v341, %v412
    %v732 = vmul.f32 %v342, %v412
    %v733 = vmul.f32 %v343, %v412
    %v734 = vmul.f32 %v344, %v412
    %v735 = vmul.f32 %v345, %v412
    %v736 = vmul.f32 %v346, %v412
    %v737 = vmul.f32 %v347, %v412
    %v738 = vmul.f32 %v348, %v412
    %v739 = vmul.f32 %v349, %v412
    %v740 = vmul.f32 %v350, %v412
    %v741 = vmul.f32 %v351, %v412
    %v742 = vmul.f32 %v352, %v412
    %v743 = vmul.f32 %v353, %v412
    %v744 = vmul.f32 %v354, %v412
    %v745 = vmul.f32 %v355, %v412
    %v746 = vmul.f32 %v356, %v412
    %v747 = vmul.f32 %v357, %v412
    %v748 = vmul.f32 %v358, %v412
    %v749 = vmul.f32 %v359, %v412
    %v750 = vmul.f32 %v360, %v412
    %v751 = vmul.f32 %v361, %v412
    %v752 = vmul.f32 %v362, %v412
    %v753 = vmul.f32 %v363, %v412
    %v754 = vmul.f32 %v364, %v412
    %v755 = vmul.f32 %v365, %v412
    %v756 = vmul.f32 %v366, %v412
    %v757 = vmul.f32 %v367, %v412
    %v758 = vmul.f32 %v368, %v412
    %v759 = vmul.f32 %v369, %v412
    %v760 = vmul.f32 %v370, %v412
    %v761 = vmul.f32 %v371, %v412
    %v762 = vmul.f32 %v372, %v412
    %v763 = vmul.f32 %v373, %v412
    %v764 = vmul.f32 %v374, %v412
    %v765 = vmul.f32 %v375, %v412
    %v766 = vmul.f32 %v376, %v412
    %v767 = vmul.f32 %v377, %v412
    %v768 = vmul.f32 %v378, %v412
    %v769 = vmul.f32 %v379, %v412
    %v770 = vmul.f32 %v380, %v412
    %v771 = vmul.f32 %v381, %v412
    %v772 = vmul.f32 %v382, %v412
    %v773 = vmul.f32 %v383, %v412
    %v774 = vmul.f32 %v384, %v412
    %v775 = vmul.f32 %v385, %v412
    %v776 = vmul.f32 %v386, %v412
    %v777 = vmul.f32 %v387, %v412
    %v778 = vmul.f32 %v388, %v412
    %v779 = vmul.f32 %v389, %v412
    %v780 = vmul.f32 %v390, %v412
    %v781 = vmul.f32 %v391, %v412
    %v782 = vmul.f32 %v392, %v412
    %v783 = vmul.f32 %v393, %v412
    %v784 = vmul.f32 %v394, %v412
    %v785 = vmul.f32 %v395, %v412
    %v786 = vmul.f32 %v396, %v412
    %v787 = vmul.f32 %v397, %v412
    %v788 = vmul.f32 %v398, %v412
    %v789 = vmul.f32 %v399, %v412
    %v790 = vmul.f32 %v400, %v412
    %v791 = vmul.f32 %v401, %v412
    %v792 = vmul.f32 %v402, %v412
    %v793 = vmul.f32 %v403, %v412
    %v794 = vmul.f32 %v404, %v412
    %v795 = vmul.f32 %v405, %v412
    %v796 = vmul.f32 %v406, %v412
    %v797 = vmul.f32 %v407, %v412
    %798 = vst [vmem:[#allocation5] sm:$0xff] %v414
    %799 = vst [vmem:[#allocation5 + $0x8] sm:$0xff] %v415
    %800 = vst [vmem:[#allocation5 + $0x10] sm:$0xff] %v416
    %801 = vst [vmem:[#allocation5 + $0x18] sm:$0xff] %v417
    %802 = vst [vmem:[#allocation5 + $0x20] sm:$0xff] %v418
    %803 = vst [vmem:[#allocation5 + $0x28] sm:$0xff] %v419
    %804 = vst [vmem:[#allocation5 + $0x30] sm:$0xff] %v420
    %805 = vst [vmem:[#allocation5 + $0x38] sm:$0xff] %v421
    %806 = vst [vmem:[#allocation5 + $0x40] sm:$0xff] %v422
    %807 = vst [vmem:[#allocation5 + $0x48] sm:$0xff] %v423
    %808 = vst [vmem:[#allocation5 + $0x50] sm:$0xff] %v424
    %809 = vst [vmem:[#allocation5 + $0x58] sm:$0xff] %v425
    %810 = vst [vmem:[#allocation5 + $0x60] sm:$0xff] %v426
    %811 = vst [vmem:[#allocation5 + $0x68] sm:$0xff] %v427
    %812 = vst [vmem:[#allocation5 + $0x70] sm:$0xff] %v428
    %813 = vst [vmem:[#allocation5 + $0x78] sm:$0xff] %v429
    %814 = vst [vmem:[#allocation5 + $0x80] sm:$0xff] %v430
    %815 = vst [vmem:[#allocation5 + $0x88] sm:$0xff] %v431
    %816 = vst [vmem:[#allocation5 + $0x90] sm:$0xff] %v432
    %817 = vst [vmem:[#allocation5 + $0x98] sm:$0xff] %v433
    %818 = vst [vmem:[#allocation5 + $0xa0] sm:$0xff] %v434
    %819 = vst [vmem:[#allocation5 + $0xa8] sm:$0xff] %v435
    %820 = vst [vmem:[#allocation5 + $0xb0] sm:$0xff] %v436
    %821 = vst [vmem:[#allocation5 + $0xb8] sm:$0xff] %v437
    %822 = vst [vmem:[#allocation5 + $0xc0] sm:$0xff] %v438
    %823 = vst [vmem:[#allocation5 + $0xc8] sm:$0xff] %v439
    %824 = vst [vmem:[#allocation5 + $0xd0] sm:$0xff] %v440
    %825 = vst [vmem:[#allocation5 + $0xd8] sm:$0xff] %v441
    %826 = vst [vmem:[#allocation5 + $0xe0] sm:$0xff] %v442
    %827 = vst [vmem:[#allocation5 + $0xe8] sm:$0xff] %v443
    %828 = vst [vmem:[#allocation5 + $0xf0] sm:$0xff] %v444
    %829 = vst [vmem:[#allocation5 + $0xf8] sm:$0xff] %v445
    %830 = vst [vmem:[#allocation5 + $0x100] sm:$0xff] %v446
    %831 = vst [vmem:[#allocation5 + $0x108] sm:$0xff] %v447
    %832 = vst [vmem:[#allocation5 + $0x110] sm:$0xff] %v448
    %833 = vst [vmem:[#allocation5 + $0x118] sm:$0xff] %v449
    %834 = vst [vmem:[#allocation5 + $0x120] sm:$0xff] %v450
    %835 = vst [vmem:[#allocation5 + $0x128] sm:$0xff] %v451
    %836 = vst [vmem:[#allocation5 + $0x130] sm:$0xff] %v452
    %837 = vst [vmem:[#allocation5 + $0x138] sm:$0xff] %v453
    %838 = vst [vmem:[#allocation5 + $0x140] sm:$0xff] %v454
    %839 = vst [vmem:[#allocation5 + $0x148] sm:$0xff] %v455
    %840 = vst [vmem:[#allocation5 + $0x150] sm:$0xff] %v456
    %841 = vst [vmem:[#allocation5 + $0x158] sm:$0xff] %v457
    %842 = vst [vmem:[#allocation5 + $0x160] sm:$0xff] %v458
    %843 = vst [vmem:[#allocation5 + $0x168] sm:$0xff] %v459
    %844 = vst [vmem:[#allocation5 + $0x170] sm:$0xff] %v460
    %845 = vst [vmem:[#allocation5 + $0x178] sm:$0xff] %v461
    %846 = vst [vmem:[#allocation5 + $0x180] sm:$0xff] %v462
    %847 = vst [vmem:[#allocation5 + $0x188] sm:$0xff] %v463
    %848 = vst [vmem:[#allocation5 + $0x190] sm:$0xff] %v464
    %849 = vst [vmem:[#allocation5 + $0x198] sm:$0xff] %v465
    %850 = vst [vmem:[#allocation5 + $0x1a0] sm:$0xff] %v466
    %851 = vst [vmem:[#allocation5 + $0x1a8] sm:$0xff] %v467
    %852 = vst [vmem:[#allocation5 + $0x1b0] sm:$0xff] %v468
    %853 = vst [vmem:[#allocation5 + $0x1b8] sm:$0xff] %v469
    %854 = vst [vmem:[#allocation5 + $0x1c0] sm:$0xff] %v470
    %855 = vst [vmem:[#allocation5 + $0x1c8] sm:$0xff] %v471
    %856 = vst [vmem:[#allocation5 + $0x1d0] sm:$0xff] %v472
    %857 = vst [vmem:[#allocation5 + $0x1d8] sm:$0xff] %v473
    %858 = vst [vmem:[#allocation5 + $0x1e0] sm:$0xff] %v474
    %859 = vst [vmem:[#allocation5 + $0x1e8] sm:$0xff] %v475
    %860 = vst [vmem:[#allocation5 + $0x1f0] sm:$0xff] %v476
    %861 = vst [vmem:[#allocation5 + $0x1f8] sm:$0xff] %v477
    %862 = vst [vmem:[#allocation5 + $0x200] sm:$0xff] %v478
    %863 = vst [vmem:[#allocation5 + $0x208] sm:$0xff] %v479
    %864 = vst [vmem:[#allocation5 + $0x210] sm:$0xff] %v480
    %865 = vst [vmem:[#allocation5 + $0x218] sm:$0xff] %v481
    %866 = vst [vmem:[#allocation5 + $0x220] sm:$0xff] %v482
    %867 = vst [vmem:[#allocation5 + $0x228] sm:$0xff] %v483
    %868 = vst [vmem:[#allocation5 + $0x230] sm:$0xff] %v484
    %869 = vst [vmem:[#allocation5 + $0x238] sm:$0xff] %v485
    %870 = vst [vmem:[#allocation5 + $0x240] sm:$0xff] %v486
    %871 = vst [vmem:[#allocation5 + $0x248] sm:$0xff] %v487
    %872 = vst [vmem:[#allocation5 + $0x250] sm:$0xff] %v488
    %873 = vst [vmem:[#allocation5 + $0x258] sm:$0xff] %v489
    %874 = vst [vmem:[#allocation5 + $0x260] sm:$0xff] %v490
    %875 = vst [vmem:[#allocation5 + $0x268] sm:$0xff] %v491
    %876 = vst [vmem:[#allocation5 + $0x270] sm:$0xff] %v492
    %877 = vst [vmem:[#allocation5 + $0x278] sm:$0xff] %v493
    %878 = vst [vmem:[#allocation5 + $0x280] sm:$0xff] %v494
    %879 = vst [vmem:[#allocation5 + $0x288] sm:$0xff] %v495
    %880 = vst [vmem:[#allocation5 + $0x290] sm:$0xff] %v496
    %881 = vst [vmem:[#allocation5 + $0x298] sm:$0xff] %v497
    %882 = vst [vmem:[#allocation5 + $0x2a0] sm:$0xff] %v498
    %883 = vst [vmem:[#allocation5 + $0x2a8] sm:$0xff] %v499
    %884 = vst [vmem:[#allocation5 + $0x2b0] sm:$0xff] %v500
    %885 = vst [vmem:[#allocation5 + $0x2b8] sm:$0xff] %v501
    %886 = vst [vmem:[#allocation5 + $0x2c0] sm:$0xff] %v502
    %887 = vst [vmem:[#allocation5 + $0x2c8] sm:$0xff] %v503
    %888 = vst [vmem:[#allocation5 + $0x2d0] sm:$0xff] %v504
    %889 = vst [vmem:[#allocation5 + $0x2d8] sm:$0xff] %v505
    %890 = vst [vmem:[#allocation5 + $0x2e0] sm:$0xff] %v506
    %891 = vst [vmem:[#allocation5 + $0x2e8] sm:$0xff] %v507
    %892 = vst [vmem:[#allocation5 + $0x2f0] sm:$0xff] %v508
    %893 = vst [vmem:[#allocation5 + $0x2f8] sm:$0xff] %v509
    %894 = vst [vmem:[#allocation5 + $0x300] sm:$0xff] %v510
    %895 = vst [vmem:[#allocation5 + $0x308] sm:$0xff] %v511
    %896 = vst [vmem:[#allocation5 + $0x310] sm:$0xff] %v512
    %897 = vst [vmem:[#allocation5 + $0x318] sm:$0xff] %v513
    %898 = vst [vmem:[#allocation5 + $0x320] sm:$0xff] %v514
    %899 = vst [vmem:[#allocation5 + $0x328] sm:$0xff] %v515
    %900 = vst [vmem:[#allocation5 + $0x330] sm:$0xff] %v516
    %901 = vst [vmem:[#allocation5 + $0x338] sm:$0xff] %v517
    %902 = vst [vmem:[#allocation5 + $0x340] sm:$0xff] %v518
    %903 = vst [vmem:[#allocation5 + $0x348] sm:$0xff] %v519
    %904 = vst [vmem:[#allocation5 + $0x350] sm:$0xff] %v520
    %905 = vst [vmem:[#allocation5 + $0x358] sm:$0xff] %v521
    %906 = vst [vmem:[#allocation5 + $0x360] sm:$0xff] %v522
    %907 = vst [vmem:[#allocation5 + $0x368] sm:$0xff] %v523
    %908 = vst [vmem:[#allocation5 + $0x370] sm:$0xff] %v524
    %909 = vst [vmem:[#allocation5 + $0x378] sm:$0xff] %v525
    %910 = vst [vmem:[#allocation5 + $0x380] sm:$0xff] %v526
    %911 = vst [vmem:[#allocation5 + $0x388] sm:$0xff] %v527
    %912 = vst [vmem:[#allocation5 + $0x390] sm:$0xff] %v528
    %913 = vst [vmem:[#allocation5 + $0x398] sm:$0xff] %v529
    %914 = vst [vmem:[#allocation5 + $0x3a0] sm:$0xff] %v530
    %915 = vst [vmem:[#allocation5 + $0x3a8] sm:$0xff] %v531
    %916 = vst [vmem:[#allocation5 + $0x3b0] sm:$0xff] %v532
    %917 = vst [vmem:[#allocation5 + $0x3b8] sm:$0xff] %v533
    %918 = vst [vmem:[#allocation5 + $0x3c0] sm:$0xff] %v534
    %919 = vst [vmem:[#allocation5 + $0x3c8] sm:$0xff] %v535
    %920 = vst [vmem:[#allocation5 + $0x3d0] sm:$0xff] %v536
    %921 = vst [vmem:[#allocation5 + $0x3d8] sm:$0xff] %v537
    %922 = vst [vmem:[#allocation5 + $0x3e0] sm:$0xff] %v538
    %923 = vst [vmem:[#allocation5 + $0x3e8] sm:$0xff] %v539
    %924 = vst [vmem:[#allocation5 + $0x3f0] sm:$0xff] %v540
    %925 = vst [vmem:[#allocation5 + $0x3f8] sm:$0xff] %v541
    %926 = vst [vmem:[#allocation5 + $0x400] sm:$0xff] %v542
    %927 = vst [vmem:[#allocation5 + $0x408] sm:$0xff] %v543
    %928 = vst [vmem:[#allocation5 + $0x410] sm:$0xff] %v544
    %929 = vst [vmem:[#allocation5 + $0x418] sm:$0xff] %v545
    %930 = vst [vmem:[#allocation5 + $0x420] sm:$0xff] %v546
    %931 = vst [vmem:[#allocation5 + $0x428] sm:$0xff] %v547
    %932 = vst [vmem:[#allocation5 + $0x430] sm:$0xff] %v548
    %933 = vst [vmem:[#allocation5 + $0x438] sm:$0xff] %v549
    %934 = vst [vmem:[#allocation5 + $0x440] sm:$0xff] %v550
    %935 = vst [vmem:[#allocation5 + $0x448] sm:$0xff] %v551
    %936 = vst [vmem:[#allocation5 + $0x450] sm:$0xff] %v552
    %937 = vst [vmem:[#allocation5 + $0x458] sm:$0xff] %v553
    %938 = vst [vmem:[#allocation5 + $0x460] sm:$0xff] %v554
    %939 = vst [vmem:[#allocation5 + $0x468] sm:$0xff] %v555
    %940 = vst [vmem:[#allocation5 + $0x470] sm:$0xff] %v556
    %941 = vst [vmem:[#allocation5 + $0x478] sm:$0xff] %v557
    %942 = vst [vmem:[#allocation5 + $0x480] sm:$0xff] %v558
    %943 = vst [vmem:[#allocation5 + $0x488] sm:$0xff] %v559
    %944 = vst [vmem:[#allocation5 + $0x490] sm:$0xff] %v560
    %945 = vst [vmem:[#allocation5 + $0x498] sm:$0xff] %v561
    %946 = vst [vmem:[#allocation5 + $0x4a0] sm:$0xff] %v562
    %947 = vst [vmem:[#allocation5 + $0x4a8] sm:$0xff] %v563
    %948 = vst [vmem:[#allocation5 + $0x4b0] sm:$0xff] %v564
    %949 = vst [vmem:[#allocation5 + $0x4b8] sm:$0xff] %v565
    %950 = vst [vmem:[#allocation5 + $0x4c0] sm:$0xff] %v566
    %951 = vst [vmem:[#allocation5 + $0x4c8] sm:$0xff] %v567
    %952 = vst [vmem:[#allocation5 + $0x4d0] sm:$0xff] %v568
    %953 = vst [vmem:[#allocation5 + $0x4d8] sm:$0xff] %v569
    %954 = vst [vmem:[#allocation5 + $0x4e0] sm:$0xff] %v570
    %955 = vst [vmem:[#allocation5 + $0x4e8] sm:$0xff] %v571
    %956 = vst [vmem:[#allocation5 + $0x4f0] sm:$0xff] %v572
    %957 = vst [vmem:[#allocation5 + $0x4f8] sm:$0xff] %v573
    %958 = vst [vmem:[#allocation5 + $0x500] sm:$0xff] %v574
    %959 = vst [vmem:[#allocation5 + $0x508] sm:$0xff] %v575
    %960 = vst [vmem:[#allocation5 + $0x510] sm:$0xff] %v576
    %961 = vst [vmem:[#allocation5 + $0x518] sm:$0xff] %v577
    %962 = vst [vmem:[#allocation5 + $0x520] sm:$0xff] %v578
    %963 = vst [vmem:[#allocation5 + $0x528] sm:$0xff] %v579
    %964 = vst [vmem:[#allocation5 + $0x530] sm:$0xff] %v580
    %965 = vst [vmem:[#allocation5 + $0x538] sm:$0xff] %v581
    %966 = vst [vmem:[#allocation5 + $0x540] sm:$0xff] %v582
    %967 = vst [vmem:[#allocation5 + $0x548] sm:$0xff] %v583
    %968 = vst [vmem:[#allocation5 + $0x550] sm:$0xff] %v584
    %969 = vst [vmem:[#allocation5 + $0x558] sm:$0xff] %v585
    %970 = vst [vmem:[#allocation5 + $0x560] sm:$0xff] %v586
    %971 = vst [vmem:[#allocation5 + $0x568] sm:$0xff] %v587
    %972 = vst [vmem:[#allocation5 + $0x570] sm:$0xff] %v588
    %973 = vst [vmem:[#allocation5 + $0x578] sm:$0xff] %v589
    %974 = vst [vmem:[#allocation5 + $0x580] sm:$0xff] %v590
    %975 = vst [vmem:[#allocation5 + $0x588] sm:$0xff] %v591
    %976 = vst [vmem:[#allocation5 + $0x590] sm:$0xff] %v592
    %977 = vst [vmem:[#allocation5 + $0x598] sm:$0xff] %v593
    %978 = vst [vmem:[#allocation5 + $0x5a0] sm:$0xff] %v594
    %979 = vst [vmem:[#allocation5 + $0x5a8] sm:$0xff] %v595
    %980 = vst [vmem:[#allocation5 + $0x5b0] sm:$0xff] %v596
    %981 = vst [vmem:[#allocation5 + $0x5b8] sm:$0xff] %v597
    %982 = vst [vmem:[#allocation5 + $0x5c0] sm:$0xff] %v598
    %983 = vst [vmem:[#allocation5 + $0x5c8] sm:$0xff] %v599
    %984 = vst [vmem:[#allocation5 + $0x5d0] sm:$0xff] %v600
    %985 = vst [vmem:[#allocation5 + $0x5d8] sm:$0xff] %v601
    %986 = vst [vmem:[#allocation5 + $0x5e0] sm:$0xff] %v602
    %987 = vst [vmem:[#allocation5 + $0x5e8] sm:$0xff] %v603
    %988 = vst [vmem:[#allocation5 + $0x5f0] sm:$0xff] %v604
    %989 = vst [vmem:[#allocation5 + $0x5f8] sm:$0xff] %v605
    %990 = vst [vmem:[#allocation5 + $0x600] sm:$0xff] %v606
    %991 = vst [vmem:[#allocation5 + $0x608] sm:$0xff] %v607
    %992 = vst [vmem:[#allocation5 + $0x610] sm:$0xff] %v608
    %993 = vst [vmem:[#allocation5 + $0x618] sm:$0xff] %v609
    %994 = vst [vmem:[#allocation5 + $0x620] sm:$0xff] %v610
    %995 = vst [vmem:[#allocation5 + $0x628] sm:$0xff] %v611
    %996 = vst [vmem:[#allocation5 + $0x630] sm:$0xff] %v612
    %997 = vst [vmem:[#allocation5 + $0x638] sm:$0xff] %v613
    %998 = vst [vmem:[#allocation5 + $0x640] sm:$0xff] %v614
    %999 = vst [vmem:[#allocation5 + $0x648] sm:$0xff] %v615
    %1000 = vst [vmem:[#allocation5 + $0x650] sm:$0xff] %v616
    %1001 = vst [vmem:[#allocation5 + $0x658] sm:$0xff] %v617
    %1002 = vst [vmem:[#allocation5 + $0x660] sm:$0xff] %v618
    %1003 = vst [vmem:[#allocation5 + $0x668] sm:$0xff] %v619
    %1004 = vst [vmem:[#allocation5 + $0x670] sm:$0xff] %v620
    %1005 = vst [vmem:[#allocation5 + $0x678] sm:$0xff] %v621
    %1006 = vst [vmem:[#allocation5 + $0x680] sm:$0xff] %v622
    %1007 = vst [vmem:[#allocation5 + $0x688] sm:$0xff] %v623
    %1008 = vst [vmem:[#allocation5 + $0x690] sm:$0xff] %v624
    %1009 = vst [vmem:[#allocation5 + $0x698] sm:$0xff] %v625
    %1010 = vst [vmem:[#allocation5 + $0x6a0] sm:$0xff] %v626
    %1011 = vst [vmem:[#allocation5 + $0x6a8] sm:$0xff] %v627
    %1012 = vst [vmem:[#allocation5 + $0x6b0] sm:$0xff] %v628
    %1013 = vst [vmem:[#allocation5 + $0x6b8] sm:$0xff] %v629
    %1014 = vst [vmem:[#allocation5 + $0x6c0] sm:$0xff] %v630
    %1015 = vst [vmem:[#allocation5 + $0x6c8] sm:$0xff] %v631
    %1016 = vst [vmem:[#allocation5 + $0x6d0] sm:$0xff] %v632
    %1017 = vst [vmem:[#allocation5 + $0x6d8] sm:$0xff] %v633
    %1018 = vst [vmem:[#allocation5 + $0x6e0] sm:$0xff] %v634
    %1019 = vst [vmem:[#allocation5 + $0x6e8] sm:$0xff] %v635
    %1020 = vst [vmem:[#allocation5 + $0x6f0] sm:$0xff] %v636
    %1021 = vst [vmem:[#allocation5 + $0x6f8] sm:$0xff] %v637
    %1022 = vst [vmem:[#allocation5 + $0x700] sm:$0xff] %v638
    %1023 = vst [vmem:[#allocation5 + $0x708] sm:$0xff] %v639
    %1024 = vst [vmem:[#allocation5 + $0x710] sm:$0xff] %v640
    %1025 = vst [vmem:[#allocation5 + $0x718] sm:$0xff] %v641
    %1026 = vst [vmem:[#allocation5 + $0x720] sm:$0xff] %v642
    %1027 = vst [vmem:[#allocation5 + $0x728] sm:$0xff] %v643
    %1028 = vst [vmem:[#allocation5 + $0x730] sm:$0xff] %v644
    %1029 = vst [vmem:[#allocation5 + $0x738] sm:$0xff] %v645
    %1030 = vst [vmem:[#allocation5 + $0x740] sm:$0xff] %v646
    %1031 = vst [vmem:[#allocation5 + $0x748] sm:$0xff] %v647
    %1032 = vst [vmem:[#allocation5 + $0x750] sm:$0xff] %v648
    %1033 = vst [vmem:[#allocation5 + $0x758] sm:$0xff] %v649
    %1034 = vst [vmem:[#allocation5 + $0x760] sm:$0xff] %v650
    %1035 = vst [vmem:[#allocation5 + $0x768] sm:$0xff] %v651
    %1036 = vst [vmem:[#allocation5 + $0x770] sm:$0xff] %v652
    %1037 = vst [vmem:[#allocation5 + $0x778] sm:$0xff] %v653
    %1038 = vst [vmem:[#allocation5 + $0x780] sm:$0xff] %v654
    %1039 = vst [vmem:[#allocation5 + $0x788] sm:$0xff] %v655
    %1040 = vst [vmem:[#allocation5 + $0x790] sm:$0xff] %v656
    %1041 = vst [vmem:[#allocation5 + $0x798] sm:$0xff] %v657
    %1042 = vst [vmem:[#allocation5 + $0x7a0] sm:$0xff] %v658
    %1043 = vst [vmem:[#allocation5 + $0x7a8] sm:$0xff] %v659
    %1044 = vst [vmem:[#allocation5 + $0x7b0] sm:$0xff] %v660
    %1045 = vst [vmem:[#allocation5 + $0x7b8] sm:$0xff] %v661
    %1046 = vst [vmem:[#allocation5 + $0x7c0] sm:$0xff] %v662
    %1047 = vst [vmem:[#allocation5 + $0x7c8] sm:$0xff] %v663
    %1048 = vst [vmem:[#allocation5 + $0x7d0] sm:$0xff] %v664
    %1049 = vst [vmem:[#allocation5 + $0x7d8] sm:$0xff] %v665
    %1050 = vst [vmem:[#allocation5 + $0x7e0] sm:$0xff] %v666
    %1051 = vst [vmem:[#allocation5 + $0x7e8] sm:$0xff] %v667
    %1052 = vst [vmem:[#allocation5 + $0x7f0] sm:$0xff] %v668
    %1053 = vst [vmem:[#allocation5 + $0x7f8] sm:$0xff] %v669
    %1054 = vst [vmem:[#allocation5 + $0x800] sm:$0xff] %v670
    %1055 = vst [vmem:[#allocation5 + $0x808] sm:$0xff] %v671
    %1056 = vst [vmem:[#allocation5 + $0x810] sm:$0xff] %v672
    %1057 = vst [vmem:[#allocation5 + $0x818] sm:$0xff] %v673
    %1058 = vst [vmem:[#allocation5 + $0x820] sm:$0xff] %v674
    %1059 = vst [vmem:[#allocation5 + $0x828] sm:$0xff] %v675
    %1060 = vst [vmem:[#allocation5 + $0x830] sm:$0xff] %v676
    %1061 = vst [vmem:[#allocation5 + $0x838] sm:$0xff] %v677
    %1062 = vst [vmem:[#allocation5 + $0x840] sm:$0xff] %v678
    %1063 = vst [vmem:[#allocation5 + $0x848] sm:$0xff] %v679
    %1064 = vst [vmem:[#allocation5 + $0x850] sm:$0xff] %v680
    %1065 = vst [vmem:[#allocation5 + $0x858] sm:$0xff] %v681
    %1066 = vst [vmem:[#allocation5 + $0x860] sm:$0xff] %v682
    %1067 = vst [vmem:[#allocation5 + $0x868] sm:$0xff] %v683
    %1068 = vst [vmem:[#allocation5 + $0x870] sm:$0xff] %v684
    %1069 = vst [vmem:[#allocation5 + $0x878] sm:$0xff] %v685
    %1070 = vst [vmem:[#allocation5 + $0x880] sm:$0xff] %v686
    %1071 = vst [vmem:[#allocation5 + $0x888] sm:$0xff] %v687
    %1072 = vst [vmem:[#allocation5 + $0x890] sm:$0xff] %v688
    %1073 = vst [vmem:[#allocation5 + $0x898] sm:$0xff] %v689
    %1074 = vst [vmem:[#allocation5 + $0x8a0] sm:$0xff] %v690
    %1075 = vst [vmem:[#allocation5 + $0x8a8] sm:$0xff] %v691
    %1076 = vst [vmem:[#allocation5 + $0x8b0] sm:$0xff] %v692
    %1077 = vst [vmem:[#allocation5 + $0x8b8] sm:$0xff] %v693
    %1078 = vst [vmem:[#allocation5 + $0x8c0] sm:$0xff] %v694
    %1079 = vst [vmem:[#allocation5 + $0x8c8] sm:$0xff] %v695
    %1080 = vst [vmem:[#allocation5 + $0x8d0] sm:$0xff] %v696
    %1081 = vst [vmem:[#allocation5 + $0x8d8] sm:$0xff] %v697
    %1082 = vst [vmem:[#allocation5 + $0x8e0] sm:$0xff] %v698
    %1083 = vst [vmem:[#allocation5 + $0x8e8] sm:$0xff] %v699
    %1084 = vst [vmem:[#allocation5 + $0x8f0] sm:$0xff] %v700
    %1085 = vst [vmem:[#allocation5 + $0x8f8] sm:$0xff] %v701
    %1086 = vst [vmem:[#allocation5 + $0x900] sm:$0xff] %v702
    %1087 = vst [vmem:[#allocation5 + $0x908] sm:$0xff] %v703
    %1088 = vst [vmem:[#allocation5 + $0x910] sm:$0xff] %v704
    %1089 = vst [vmem:[#allocation5 + $0x918] sm:$0xff] %v705
    %1090 = vst [vmem:[#allocation5 + $0x920] sm:$0xff] %v706
    %1091 = vst [vmem:[#allocation5 + $0x928] sm:$0xff] %v707
    %1092 = vst [vmem:[#allocation5 + $0x930] sm:$0xff] %v708
    %1093 = vst [vmem:[#allocation5 + $0x938] sm:$0xff] %v709
    %1094 = vst [vmem:[#allocation5 + $0x940] sm:$0xff] %v710
    %1095 = vst [vmem:[#allocation5 + $0x948] sm:$0xff] %v711
    %1096 = vst [vmem:[#allocation5 + $0x950] sm:$0xff] %v712
    %1097 = vst [vmem:[#allocation5 + $0x958] sm:$0xff] %v713
    %1098 = vst [vmem:[#allocation5 + $0x960] sm:$0xff] %v714
    %1099 = vst [vmem:[#allocation5 + $0x968] sm:$0xff] %v715
    %1100 = vst [vmem:[#allocation5 + $0x970] sm:$0xff] %v716
    %1101 = vst [vmem:[#allocation5 + $0x978] sm:$0xff] %v717
    %1102 = vst [vmem:[#allocation5 + $0x980] sm:$0xff] %v718
    %1103 = vst [vmem:[#allocation5 + $0x988] sm:$0xff] %v719
    %1104 = vst [vmem:[#allocation5 + $0x990] sm:$0xff] %v720
    %1105 = vst [vmem:[#allocation5 + $0x998] sm:$0xff] %v721
    %1106 = vst [vmem:[#allocation5 + $0x9a0] sm:$0xff] %v722
    %1107 = vst [vmem:[#allocation5 + $0x9a8] sm:$0xff] %v723
    %1108 = vst [vmem:[#allocation5 + $0x9b0] sm:$0xff] %v724
    %1109 = vst [vmem:[#allocation5 + $0x9b8] sm:$0xff] %v725
    %1110 = vst [vmem:[#allocation5 + $0x9c0] sm:$0xff] %v726
    %1111 = vst [vmem:[#allocation5 + $0x9c8] sm:$0xff] %v727
    %1112 = vst [vmem:[#allocation5 + $0x9d0] sm:$0xff] %v728
    %1113 = vst [vmem:[#allocation5 + $0x9d8] sm:$0xff] %v729
    %1114 = vst [vmem:[#allocation5 + $0x9e0] sm:$0xff] %v730
    %1115 = vst [vmem:[#allocation5 + $0x9e8] sm:$0xff] %v731
    %1116 = vst [vmem:[#allocation5 + $0x9f0] sm:$0xff] %v732
    %1117 = vst [vmem:[#allocation5 + $0x9f8] sm:$0xff] %v733
    %1118 = vst [vmem:[#allocation5 + $0xa00] sm:$0xff] %v734
    %1119 = vst [vmem:[#allocation5 + $0xa08] sm:$0xff] %v735
    %1120 = vst [vmem:[#allocation5 + $0xa10] sm:$0xff] %v736
    %1121 = vst [vmem:[#allocation5 + $0xa18] sm:$0xff] %v737
    %1122 = vst [vmem:[#allocation5 + $0xa20] sm:$0xff] %v738
    %1123 = vst [vmem:[#allocation5 + $0xa28] sm:$0xff] %v739
    %1124 = vst [vmem:[#allocation5 + $0xa30] sm:$0xff] %v740
    %1125 = vst [vmem:[#allocation5 + $0xa38] sm:$0xff] %v741
    %1126 = vst [vmem:[#allocation5 + $0xa40] sm:$0xff] %v742
    %1127 = vst [vmem:[#allocation5 + $0xa48] sm:$0xff] %v743
    %1128 = vst [vmem:[#allocation5 + $0xa50] sm:$0xff] %v744
    %1129 = vst [vmem:[#allocation5 + $0xa58] sm:$0xff] %v745
    %1130 = vst [vmem:[#allocation5 + $0xa60] sm:$0xff] %v746
    %1131 = vst [vmem:[#allocation5 + $0xa68] sm:$0xff] %v747
    %1132 = vst [vmem:[#allocation5 + $0xa70] sm:$0xff] %v748
    %1133 = vst [vmem:[#allocation5 + $0xa78] sm:$0xff] %v749
    %1134 = vst [vmem:[#allocation5 + $0xa80] sm:$0xff] %v750
    %1135 = vst [vmem:[#allocation5 + $0xa88] sm:$0xff] %v751
    %1136 = vst [vmem:[#allocation5 + $0xa90] sm:$0xff] %v752
    %1137 = vst [vmem:[#allocation5 + $0xa98] sm:$0xff] %v753
    %1138 = vst [vmem:[#allocation5 + $0xaa0] sm:$0xff] %v754
    %1139 = vst [vmem:[#allocation5 + $0xaa8] sm:$0xff] %v755
    %1140 = vst [vmem:[#allocation5 + $0xab0] sm:$0xff] %v756
    %1141 = vst [vmem:[#allocation5 + $0xab8] sm:$0xff] %v757
    %1142 = vst [vmem:[#allocation5 + $0xac0] sm:$0xff] %v758
    %1143 = vst [vmem:[#allocation5 + $0xac8] sm:$0xff] %v759
    %1144 = vst [vmem:[#allocation5 + $0xad0] sm:$0xff] %v760
    %1145 = vst [vmem:[#allocation5 + $0xad8] sm:$0xff] %v761
    %1146 = vst [vmem:[#allocation5 + $0xae0] sm:$0xff] %v762
    %1147 = vst [vmem:[#allocation5 + $0xae8] sm:$0xff] %v763
    %1148 = vst [vmem:[#allocation5 + $0xaf0] sm:$0xff] %v764
    %1149 = vst [vmem:[#allocation5 + $0xaf8] sm:$0xff] %v765
    %1150 = vst [vmem:[#allocation5 + $0xb00] sm:$0xff] %v766
    %1151 = vst [vmem:[#allocation5 + $0xb08] sm:$0xff] %v767
    %1152 = vst [vmem:[#allocation5 + $0xb10] sm:$0xff] %v768
    %1153 = vst [vmem:[#allocation5 + $0xb18] sm:$0xff] %v769
    %1154 = vst [vmem:[#allocation5 + $0xb20] sm:$0xff] %v770
    %1155 = vst [vmem:[#allocation5 + $0xb28] sm:$0xff] %v771
    %1156 = vst [vmem:[#allocation5 + $0xb30] sm:$0xff] %v772
    %1157 = vst [vmem:[#allocation5 + $0xb38] sm:$0xff] %v773
    %1158 = vst [vmem:[#allocation5 + $0xb40] sm:$0xff] %v774
    %1159 = vst [vmem:[#allocation5 + $0xb48] sm:$0xff] %v775
    %1160 = vst [vmem:[#allocation5 + $0xb50] sm:$0xff] %v776
    %1161 = vst [vmem:[#allocation5 + $0xb58] sm:$0xff] %v777
    %1162 = vst [vmem:[#allocation5 + $0xb60] sm:$0xff] %v778
    %1163 = vst [vmem:[#allocation5 + $0xb68] sm:$0xff] %v779
    %1164 = vst [vmem:[#allocation5 + $0xb70] sm:$0xff] %v780
    %1165 = vst [vmem:[#allocation5 + $0xb78] sm:$0xff] %v781
    %1166 = vst [vmem:[#allocation5 + $0xb80] sm:$0xff] %v782
    %1167 = vst [vmem:[#allocation5 + $0xb88] sm:$0xff] %v783
    %1168 = vst [vmem:[#allocation5 + $0xb90] sm:$0xff] %v784
    %1169 = vst [vmem:[#allocation5 + $0xb98] sm:$0xff] %v785
    %1170 = vst [vmem:[#allocation5 + $0xba0] sm:$0xff] %v786
    %1171 = vst [vmem:[#allocation5 + $0xba8] sm:$0xff] %v787
    %1172 = vst [vmem:[#allocation5 + $0xbb0] sm:$0xff] %v788
    %1173 = vst [vmem:[#allocation5 + $0xbb8] sm:$0xff] %v789
    %1174 = vst [vmem:[#allocation5 + $0xbc0] sm:$0xff] %v790
    %1175 = vst [vmem:[#allocation5 + $0xbc8] sm:$0xff] %v791
    %1176 = vst [vmem:[#allocation5 + $0xbd0] sm:$0xff] %v792
    %1177 = vst [vmem:[#allocation5 + $0xbd8] sm:$0xff] %v793
    %1178 = vst [vmem:[#allocation5 + $0xbe0] sm:$0xff] %v794
    %1179 = vst [vmem:[#allocation5 + $0xbe8] sm:$0xff] %v795
    %1180 = vst [vmem:[#allocation5 + $0xbf0] sm:$0xff] %v796
    %1181 = vst [vmem:[#allocation5 + $0xbf8] sm:$0xff] %v797
    // Predicated region
    $region14: #{tpu_custom_call.1} parent=1 // pred_check
      _
    $region15: #{tpu_custom_call.1} parent=1 // pred_check_branch
      %1183 = sbr.rel (0) target = $region17
    $region16: #{tpu_custom_call.1} parent=1 // pred_region
      %s1185 = ssub.s32 49152, 49152
      %1186 = vsyncadd [#allocation4], %s1185
      %s1188 = sshll.u32 [#allocation5], 4
      %s1189 = int_to_ptr.vmem [resolvable:$true] %s1188
      %1191 = dma.vmem_to_hbm [thread:$0]  %s1189, 49152, %s2, [#allocation4]
    $region17: #{tpu_custom_call.1} parent=1 // pred_fallthru
      _
    // Predicated region
    $region18: #{tpu_custom_call.1} parent=1 // pred_check
      _
    $region19: #{tpu_custom_call.1} parent=1 // pred_check_branch
      %1193 = sbr.rel (0) target = $region21
    $region20: #{tpu_custom_call.1} parent=1 // pred_region
      %1194 = dma.done [#allocation4], 49152
    $region21: #{tpu_custom_call.1} parent=1 // pred_fallthru
      _
    %1195 = vsyncpa [#allocation3], 1
    %1196 = vsyncpa [#allocation4], 1

</llo_original>
